<compile_context>
chip_gen: v5e
topology: v5e:2x2
jax: 0.10.0
libtpu: 0.0.40
codegen_flags: <defaults>
</compile_context>

<pallas_src>
import functools

import jax
import jax.numpy as jnp
from jax.experimental import pallas as pl
from jax.experimental.pallas import tpu as pltpu


def _round_up(v, m):
    return -(-v // m) * m


def _largest_divisor_leq(n, cap):
    cap = int(max(1, min(n, cap)))
    for d in range(cap, 0, -1):
        if n % d == 0:
            return d
    return 1


def _pick_tiles(N, C, HW, itemsize, max_channels_per_step=None):
    hw_pad = _round_up(HW, 128)
    budget = 8 * 1024 * 1024            # per x VMEM buffer (Pallas double-buffers it)

    def row_bytes(tcc):                 # padded bytes of one batch row of an x block
        return _round_up(max(tcc, 1), 8) * hw_pad * itemsize

    # Channel block: largest divisor of C that is a multiple of 8 (or C itself,
    # i.e. the full dim -- both satisfy the (8,128) block rule) fitting the
    # budget.  Optional cap is a tuning/test knob forcing extra reduction steps.
    cands = sorted({C} | {d for d in range(8, C, 8) if C % d == 0})
    if max_channels_per_step is not None:
        capped = [t for t in cands if t <= max_channels_per_step]
        if capped:
            cands = capped
    fitting = [t for t in cands if row_bytes(t) <= budget]
    tcc = max(fitting) if fitting else min(cands)

    # Batch block: budget-driven, but keep >= 2 batch grid steps when N >= 2 so
    # both v7x TensorCores get a "parallel" step, and bound the output block.
    nb_cap = max(1, N // 2) if N >= 2 else 1
    nb_budget = max(1, budget // row_bytes(tcc))
    nb_out = max(1, (2 * 1024 * 1024) // (8 * hw_pad * itemsize))
    nb = _largest_divisor_leq(N, min(nb_cap, nb_budget, nb_out))

    # In-kernel compute chunking: bounds the live vreg set independent of the
    # (possibly multi-MiB) DMA block size.
    ch = min(tcc, 16)
    nbi = max(1, min(nb, (128 * 1024) // max(1, ch * hw_pad * itemsize)))
    return nb, tcc, ch, nbi


def _tree_max_channels(v):
    """Pairwise (halving) max over axis 1 of a (nb, t, HW) value -> (nb, HW)."""
    t = v.shape[1]
    leftovers = []
    while t > 1:
        if t % 2:
            leftovers.append(v[:, t - 1, :])
            t -= 1
        h = t // 2
        v = jnp.maximum(v[:, :h, :], v[:, h:t, :])
        t = h
    out = v[:, 0, :]
    for extra in leftovers:
        out = jnp.maximum(out, extra)
    return out


def _spatial_attention_kernel(w_ref, x_ref, o_ref, max_ref, pad_ref, *,
                              K, P, NB, TCC, H, W, CH, NBI, SPAD):
    # w_ref:   (K, K) f32 in SMEM (cheap scalar reads).
    # x_ref:   (NB, TCC, HW) lane-dense VMEM tile.
    # o_ref:   (NB, 1, HW) lane-dense VMEM output tile (last channel step only).
    # max_ref: (NB, HW) running channel-max accumulator (persists across c).
    # pad_ref: (NB, HW + 2*SPAD) f32 zero-padded flat map for the conv.
    HW = H * W
    c = pl.program_id(1)
    nc = pl.num_programs(1)

    @pl.when(c == 0)
    def _init():
        max_ref[...] = jnp.full(max_ref.shape, -jnp.inf, max_ref.dtype)
        pad_ref[...] = jnp.zeros_like(pad_ref)

    # ---- running channel max: pairwise tree inside bounded-size chunks ----
    for b0 in range(0, NB, NBI):
        b1 = min(NB, b0 + NBI)
        running = None
        for c0 in range(0, TCC, CH):
            c1 = min(TCC, c0 + CH)
            cm = _tree_max_channels(x_ref[b0:b1, c0:c1, :])
            running = cm if running is None else jnp.maximum(running, cm)
        max_ref[b0:b1, :] = jnp.maximum(max_ref[b0:b1, :], running)

    # ---- KxK conv (flattened lane domain) + sigmoid, last channel step only ----
    @pl.when(c == nc - 1)
    def _finalize():
        col = jax.lax.broadcasted_iota(jnp.int32, (1, HW), 1) % W
        # Column validity masks for the 2P+1 horizontal offsets (row validity is
        # handled for free by the lane-aligned zero pad of width SPAD >= P*W+P).
        col_ok = [(col + d >= 0) & (col + d < W) for d in range(-P, P + 1)]
        for b0 in range(0, NB, NBI):
            b1 = min(NB, b0 + NBI)
            pad_ref[b0:b1, SPAD:SPAD + HW] = max_ref[b0:b1, :].astype(jnp.float32)
            acc = jnp.zeros((b1 - b0, HW), jnp.float32)
            for ki in range(K):
                di = ki - P
                for kj in range(K):
                    dj = kj - P
                    start = SPAD + di * W + dj
                    src = pad_ref[b0:b1, start:start + HW]
                    if dj != 0:
                        src = jnp.where(col_ok[kj], src, 0.0)
                    acc = acc + w_ref[ki, kj] * src
            o_ref[b0:b1, 0, :] = jax.nn.sigmoid(acc).astype(o_ref.dtype)


def spatial_attention(x, weight, kernel_size=7, max_channels_per_step=None):
    """x: (N, C, H, W); weight: (K, K) conv kernel (1 in-chan, 1 out-chan, no bias)."""
    assert kernel_size in (3, 7), "kernel size must be 3 or 7"
    N, C, H, W = x.shape
    K = kernel_size
    P = K // 2
    HW = H * W
    itemsize = jnp.dtype(x.dtype).itemsize

    NB, TCC, CH, NBI = _pick_tiles(N, C, HW, itemsize, max_channels_per_step)
    SPAD = _round_up(P * W + P, 128)       # lane-aligned zero pad per flat row

    x_flat = x.reshape(N, C, HW)           # free reshape: lane-dense minor dim

    kernel = functools.partial(
        _spatial_attention_kernel,
        K=K, P=P, NB=NB, TCC=TCC, H=H, W=W, CH=CH, NBI=NBI, SPAD=SPAD)

    out_flat = pl.pallas_call(
        kernel,
        out_shape=jax.ShapeDtypeStruct((N, 1, HW), x.dtype),
        grid_spec=pltpu.PrefetchScalarGridSpec(
            num_scalar_prefetch=0,
            grid=(N // NB, C // TCC),       # channel-reduction axis last
            in_specs=[
                # Conv weight: tiny, keep in SMEM for scalar indexing.
                pl.BlockSpec(memory_space=pltpu.MemorySpace.SMEM),
                # Lane-dense (NB, TCC, HW) slab per grid step.
                pl.BlockSpec((NB, TCC, HW), lambda b, c: (b, c, 0)),
            ],
            out_specs=pl.BlockSpec((NB, 1, HW), lambda b, c: (b, 0, 0)),
            scratch_shapes=[
                pltpu.VMEM((NB, HW), x.dtype),                  # running channel max
                pltpu.VMEM((NB, HW + 2 * SPAD), jnp.float32),   # zero-padded flat map
            ],
        ),
        compiler_params=pltpu.CompilerParams(
            # Batch blocks are independent -> shard across v7x's two cores;
            # channel axis is a reduction -> "arbitrary".
            dimension_semantics=("parallel", "arbitrary"),
            # Explicit limit: safe on v5e (16 MiB scoped default), v6e, and
            # v7x (64 MiB physical); actual use is <= ~25 MiB at worst.
            vmem_limit_bytes=40 * 1024 * 1024,
        ),
    )(weight.astype(jnp.float32), x_flat)

    return out_flat.reshape(N, 1, H, W)


def _reference(x, weight, kernel_size=7):
    """Pure-JAX reference mirroring the PyTorch forward, for verification."""
    P = kernel_size // 2
    m = jnp.max(x, axis=1, keepdims=True).astype(jnp.float32)
    w = weight.reshape(1, 1, kernel_size, kernel_size).astype(jnp.float32)
    y = jax.lax.conv_general_dilated(
        m, w, window_strides=(1, 1), padding=[(P, P), (P, P)],
        dimension_numbers=("NCHW", "OIHW", "NCHW"),
        precision=jax.lax.Precision.HIGHEST,
    )
    return jax.nn.sigmoid(y).astype(x.dtype)


if __name__ == "__main__":
    key = jax.random.PRNGKey(0)
    kx, kw = jax.random.split(key)
    K = 7

    # Deterministic Conv2d(1, 1, 7, bias=False)-style weight init
    # (uniform with bound = 1/sqrt(fan_in), fan_in = 1*7*7).
    bound = 1.0 / float(K)
    weight = jax.random.uniform(
        kw, (K, K), dtype=jnp.float32, minval=-bound, maxval=bound)

    # Shape 1: the module's small reference shape.
    # Shape 2: larger C with a forced channel cap -> exercises the multi-step
    #          "arbitrary" reduction and the running-max accumulator.
    # Shape 3: odd channel count -> exercises the leftover path of the tree max.
    # Shape 4: non-16x16 spatial (H*W not a multiple of 128) -> exercises the
    #          masked-tail lane handling of the flat-domain conv.
    cases = [
        ((2, 4, 16, 16), None),
        ((2, 48, 16, 16), 16),
        ((2, 12, 16, 16), None),
        ((2, 8, 12, 12), None),
    ]
    for (N, C, H, W), cap in cases:
        x = jax.random.normal(kx, (N, C, H, W), dtype=jnp.float32)

        out = spatial_attention(x, weight, kernel_size=K,
                                max_channels_per_step=cap)
        out = jax.block_until_ready(out)

        ref = _reference(x, weight, kernel_size=K)
        assert out.shape == (N, 1, H, W)
        assert jnp.allclose(out, ref, atol=1e-5, rtol=1e-5), (
            f"mismatch vs reference at shape {(N, C, H, W)}")

    print("KERNEL_OK")
</pallas_src>

<mosaic_0001>
module attributes {stable_mosaic.version = 11 : i64} {
  func.func @_spatial_attention_kernel(%arg0: i32, %arg1: i32, %arg2: memref<7x7xf32, #tpu.memory_space<smem>>, %arg3: memref<1x4x256xf32, #tpu.memory_space<vmem>>, %arg4: memref<1x1x256xf32, #tpu.memory_space<vmem>>, %arg5: memref<1x256xf32, #tpu.memory_space<vmem>>, %arg6: memref<1x512xf32, #tpu.memory_space<vmem>>) attributes {dimension_semantics = [#tpu.dimension_semantics<parallel>, #tpu.dimension_semantics<arbitrary>], iteration_bounds = array<i64: 2, 1>, scalar_prefetch = 0 : i64, scratch_operands = 2 : i64, tpu.core_type = #tpu.core_type<tc>, window_params = [{transform_indices = @transform_0, window_bounds = array<i64: 7, 7>}, {transform_indices = @transform_1, window_bounds = array<i64: 1, 4, 256>}, {transform_indices = @transform_2, window_bounds = array<i64: 1, 1, 256>}]} {
    %c0_i32 = arith.constant 0 : i32
    %0 = arith.cmpi eq, %arg1, %c0_i32 : i32
    %1 = arith.extui %0 : i1 to i32
    %c0_i32_0 = arith.constant 0 : i32
    %2 = arith.cmpi ne, %1, %c0_i32_0 : i32
    scf.if %2 {
      %cst = arith.constant 0xFF800000 : f32
      %17 = vector.broadcast %cst : f32 to vector<1x256xf32>
      %c0_9 = arith.constant 0 : index
      %c0_10 = arith.constant 0 : index
      %18 = vector.load %arg5[%c0_9, %c0_10] : memref<1x256xf32, #tpu.memory_space<vmem>>, vector<1x256xf32>
      tpu.vector_store %arg5[%c0_9, %c0_10], %17 {strides = array<i32>} : memref<1x256xf32, #tpu.memory_space<vmem>>, vector<1x256xf32>,
      %cst_11 = arith.constant 0.000000e+00 : f32
      %19 = vector.broadcast %cst_11 : f32 to vector<1x512xf32>
      %c0_12 = arith.constant 0 : index
      %c0_13 = arith.constant 0 : index
      %20 = vector.load %arg6[%c0_12, %c0_13] : memref<1x512xf32, #tpu.memory_space<vmem>>, vector<1x512xf32>
      tpu.vector_store %arg6[%c0_12, %c0_13], %19 {strides = array<i32>} : memref<1x512xf32, #tpu.memory_space<vmem>>, vector<1x512xf32>,
    } else {
    }
    %c0 = arith.constant 0 : index
    %c0_1 = arith.constant 0 : index
    %c0_2 = arith.constant 0 : index
    %3 = vector.load %arg3[%c0, %c0_1, %c0_2] : memref<1x4x256xf32, #tpu.memory_space<vmem>>, vector<1x4x256xf32>
    %4 = vector.extract_strided_slice %3 {offsets = [0, 0, 0], sizes = [1, 2, 256], strides = [1, 1, 1]} : vector<1x4x256xf32> to vector<1x2x256xf32>
    %5 = vector.extract_strided_slice %3 {offsets = [0, 2, 0], sizes = [1, 2, 256], strides = [1, 1, 1]} : vector<1x4x256xf32> to vector<1x2x256xf32>
    %6 = arith.maximumf %4, %5 : vector<1x2x256xf32>
    %7 = vector.extract_strided_slice %6 {offsets = [0, 0, 0], sizes = [1, 1, 256], strides = [1, 1, 1]} : vector<1x2x256xf32> to vector<1x1x256xf32>
    %8 = vector.extract_strided_slice %6 {offsets = [0, 1, 0], sizes = [1, 1, 256], strides = [1, 1, 1]} : vector<1x2x256xf32> to vector<1x1x256xf32>
    %9 = arith.maximumf %7, %8 : vector<1x1x256xf32>
    %10 = vector.shape_cast %9 : vector<1x1x256xf32> to vector<1x256xf32>
    %c0_3 = arith.constant 0 : index
    %c0_4 = arith.constant 0 : index
    %11 = vector.load %arg5[%c0_3, %c0_4] : memref<1x256xf32, #tpu.memory_space<vmem>>, vector<1x256xf32>
    %12 = arith.maximumf %11, %10 : vector<1x256xf32>
    %c0_5 = arith.constant 0 : index
    %c0_6 = arith.constant 0 : index
    %13 = vector.load %arg5[%c0_5, %c0_6] : memref<1x256xf32, #tpu.memory_space<vmem>>, vector<1x256xf32>
    tpu.vector_store %arg5[%c0_5, %c0_6], %12 {strides = array<i32>} : memref<1x256xf32, #tpu.memory_space<vmem>>, vector<1x256xf32>,
    %c0_i32_7 = arith.constant 0 : i32
    %14 = arith.cmpi eq, %arg1, %c0_i32_7 : i32
    %15 = arith.extui %14 : i1 to i32
    %c0_i32_8 = arith.constant 0 : i32
    %16 = arith.cmpi ne, %15, %c0_i32_8 : i32
    scf.if %16 {
      %17 = tpu.iota {dimensions = array<i32: 1>} : vector<1x256xi32>
      %c16_i32 = arith.constant 16 : i32
      %c0_i32_9 = arith.constant 0 : i32
      %18 = arith.cmpi eq, %c16_i32, %c0_i32_9 : i32
      %c1_i32 = arith.constant 1 : i32
      %19 = arith.select %18, %c1_i32, %c16_i32 : i32
      %20 = vector.broadcast %19 : i32 to vector<1x256xi32>
      %21 = arith.remsi %17, %20 : vector<1x256xi32>
      %c0_i32_10 = arith.constant 0 : i32
      %22 = vector.broadcast %c0_i32_10 : i32 to vector<1x256xi32>
      %23 = arith.cmpi ne, %21, %22 : vector<1x256xi32>
      %c0_i32_11 = arith.constant 0 : i32
      %24 = vector.broadcast %c0_i32_11 : i32 to vector<1x256xi32>
      %25 = arith.cmpi slt, %21, %24 : vector<1x256xi32>
      %c0_i32_12 = arith.constant 0 : i32
      %26 = arith.cmpi slt, %19, %c0_i32_12 : i32
      %27 = vector.broadcast %26 : i1 to vector<1x256xi1>
      %28 = vector.broadcast %27 : vector<1x256xi1> to vector<1x256xi1>
      %29 = arith.xori %25, %28 : vector<1x256xi1>
      %30 = arith.andi %29, %23 : vector<1x256xi1>
      %31 = vector.broadcast %19 : i32 to vector<1x256xi32>
      %32 = arith.addi %21, %31 : vector<1x256xi32>
      %33 = arith.select %30, %32, %21 : vector<1x256xi1>, vector<1x256xi32>
      %c-3_i32 = arith.constant -3 : i32
      %34 = vector.broadcast %c-3_i32 : i32 to vector<1x256xi32>
      %35 = arith.addi %33, %34 : vector<1x256xi32>
      %c0_i32_13 = arith.constant 0 : i32
      %36 = vector.broadcast %c0_i32_13 : i32 to vector<1x256xi32>
      %37 = arith.cmpi sge, %35, %36 : vector<1x256xi32>
      %c-3_i32_14 = arith.constant -3 : i32
      %38 = vector.broadcast %c-3_i32_14 : i32 to vector<1x256xi32>
      %39 = arith.addi %33, %38 : vector<1x256xi32>
      %c16_i32_15 = arith.constant 16 : i32
      %40 = vector.broadcast %c16_i32_15 : i32 to vector<1x256xi32>
      %41 = arith.cmpi slt, %39, %40 : vector<1x256xi32>
      %42 = arith.andi %37, %41 : vector<1x256xi1>
      %c-2_i32 = arith.constant -2 : i32
      %43 = vector.broadcast %c-2_i32 : i32 to vector<1x256xi32>
      %44 = arith.addi %33, %43 : vector<1x256xi32>
      %c0_i32_16 = arith.constant 0 : i32
      %45 = vector.broadcast %c0_i32_16 : i32 to vector<1x256xi32>
      %46 = arith.cmpi sge, %44, %45 : vector<1x256xi32>
      %c-2_i32_17 = arith.constant -2 : i32
      %47 = vector.broadcast %c-2_i32_17 : i32 to vector<1x256xi32>
      %48 = arith.addi %33, %47 : vector<1x256xi32>
      %c16_i32_18 = arith.constant 16 : i32
      %49 = vector.broadcast %c16_i32_18 : i32 to vector<1x256xi32>
      %50 = arith.cmpi slt, %48, %49 : vector<1x256xi32>
      %51 = arith.andi %46, %50 : vector<1x256xi1>
      %c-1_i32 = arith.constant -1 : i32
      %52 = vector.broadcast %c-1_i32 : i32 to vector<1x256xi32>
      %53 = arith.addi %33, %52 : vector<1x256xi32>
      %c0_i32_19 = arith.constant 0 : i32
      %54 = vector.broadcast %c0_i32_19 : i32 to vector<1x256xi32>
      %55 = arith.cmpi sge, %53, %54 : vector<1x256xi32>
      %c-1_i32_20 = arith.constant -1 : i32
      %56 = vector.broadcast %c-1_i32_20 : i32 to vector<1x256xi32>
      %57 = arith.addi %33, %56 : vector<1x256xi32>
      %c16_i32_21 = arith.constant 16 : i32
      %58 = vector.broadcast %c16_i32_21 : i32 to vector<1x256xi32>
      %59 = arith.cmpi slt, %57, %58 : vector<1x256xi32>
      %60 = arith.andi %55, %59 : vector<1x256xi1>
      %c1_i32_22 = arith.constant 1 : i32
      %61 = vector.broadcast %c1_i32_22 : i32 to vector<1x256xi32>
      %62 = arith.addi %33, %61 : vector<1x256xi32>
      %c0_i32_23 = arith.constant 0 : i32
      %63 = vector.broadcast %c0_i32_23 : i32 to vector<1x256xi32>
      %64 = arith.cmpi sge, %62, %63 : vector<1x256xi32>
      %c1_i32_24 = arith.constant 1 : i32
      %65 = vector.broadcast %c1_i32_24 : i32 to vector<1x256xi32>
      %66 = arith.addi %33, %65 : vector<1x256xi32>
      %c16_i32_25 = arith.constant 16 : i32
      %67 = vector.broadcast %c16_i32_25 : i32 to vector<1x256xi32>
      %68 = arith.cmpi slt, %66, %67 : vector<1x256xi32>
      %69 = arith.andi %64, %68 : vector<1x256xi1>
      %c2_i32 = arith.constant 2 : i32
      %70 = vector.broadcast %c2_i32 : i32 to vector<1x256xi32>
      %71 = arith.addi %33, %70 : vector<1x256xi32>
      %c0_i32_26 = arith.constant 0 : i32
      %72 = vector.broadcast %c0_i32_26 : i32 to vector<1x256xi32>
      %73 = arith.cmpi sge, %71, %72 : vector<1x256xi32>
      %c2_i32_27 = arith.constant 2 : i32
      %74 = vector.broadcast %c2_i32_27 : i32 to vector<1x256xi32>
      %75 = arith.addi %33, %74 : vector<1x256xi32>
      %c16_i32_28 = arith.constant 16 : i32
      %76 = vector.broadcast %c16_i32_28 : i32 to vector<1x256xi32>
      %77 = arith.cmpi slt, %75, %76 : vector<1x256xi32>
      %78 = arith.andi %73, %77 : vector<1x256xi1>
      %c3_i32 = arith.constant 3 : i32
      %79 = vector.broadcast %c3_i32 : i32 to vector<1x256xi32>
      %80 = arith.addi %33, %79 : vector<1x256xi32>
      %c0_i32_29 = arith.constant 0 : i32
      %81 = vector.broadcast %c0_i32_29 : i32 to vector<1x256xi32>
      %82 = arith.cmpi sge, %80, %81 : vector<1x256xi32>
      %c3_i32_30 = arith.constant 3 : i32
      %83 = vector.broadcast %c3_i32_30 : i32 to vector<1x256xi32>
      %84 = arith.addi %33, %83 : vector<1x256xi32>
      %c16_i32_31 = arith.constant 16 : i32
      %85 = vector.broadcast %c16_i32_31 : i32 to vector<1x256xi32>
      %86 = arith.cmpi slt, %84, %85 : vector<1x256xi32>
      %87 = arith.andi %82, %86 : vector<1x256xi1>
      %c0_32 = arith.constant 0 : index
      %c0_33 = arith.constant 0 : index
      %88 = vector.load %arg5[%c0_32, %c0_33] : memref<1x256xf32, #tpu.memory_space<vmem>>, vector<1x256xf32>
      %c0_34 = arith.constant 0 : index
      %c128 = arith.constant 128 : index
      %89 = vector.load %arg6[%c0_34, %c128] : memref<1x512xf32, #tpu.memory_space<vmem>>, vector<1x256xf32>
      tpu.vector_store %arg6[%c0_34, %c128], %88 {strides = array<i32>} : memref<1x512xf32, #tpu.memory_space<vmem>>, vector<1x256xf32>,
      %cst = arith.constant 0.000000e+00 : f32
      %90 = vector.broadcast %cst : f32 to vector<1x256xf32>
      %c0_35 = arith.constant 0 : index
      %c77 = arith.constant 77 : index
      %91 = vector.load %arg6[%c0_35, %c77] : memref<1x512xf32, #tpu.memory_space<vmem>>, vector<1x256xf32>
      %cst_36 = arith.constant 0.000000e+00 : f32
      %92 = vector.broadcast %cst_36 : f32 to vector<1x256xf32>
      %93 = arith.select %42, %91, %92 : vector<1x256xi1>, vector<1x256xf32>
      %c0_37 = arith.constant 0 : index
      %c0_38 = arith.constant 0 : index
      %94 = memref.load %arg2[%c0_37, %c0_38] : memref<7x7xf32, #tpu.memory_space<smem>>
      %95 = vector.broadcast %94 : f32 to vector<1x256xf32>
      %96 = arith.mulf %95, %93 : vector<1x256xf32>
      %97 = arith.addf %90, %96 : vector<1x256xf32>
      %c0_39 = arith.constant 0 : index
      %c78 = arith.constant 78 : index
      %98 = vector.load %arg6[%c0_39, %c78] : memref<1x512xf32, #tpu.memory_space<vmem>>, vector<1x256xf32>
      %cst_40 = arith.constant 0.000000e+00 : f32
      %99 = vector.broadcast %cst_40 : f32 to vector<1x256xf32>
      %100 = arith.select %51, %98, %99 : vector<1x256xi1>, vector<1x256xf32>
      %c0_41 = arith.constant 0 : index
      %c1 = arith.constant 1 : index
      %101 = memref.load %arg2[%c0_41, %c1] : memref<7x7xf32, #tpu.memory_space<smem>>
      %102 = vector.broadcast %101 : f32 to vector<1x256xf32>
      %103 = arith.mulf %102, %100 : vector<1x256xf32>
      %104 = arith.addf %97, %103 : vector<1x256xf32>
      %c0_42 = arith.constant 0 : index
      %c79 = arith.constant 79 : index
      %105 = vector.load %arg6[%c0_42, %c79] : memref<1x512xf32, #tpu.memory_space<vmem>>, vector<1x256xf32>
      %cst_43 = arith.constant 0.000000e+00 : f32
      %106 = vector.broadcast %cst_43 : f32 to vector<1x256xf32>
      %107 = arith.select %60, %105, %106 : vector<1x256xi1>, vector<1x256xf32>
      %c0_44 = arith.constant 0 : index
      %c2 = arith.constant 2 : index
      %108 = memref.load %arg2[%c0_44, %c2] : memref<7x7xf32, #tpu.memory_space<smem>>
      %109 = vector.broadcast %108 : f32 to vector<1x256xf32>
      %110 = arith.mulf %109, %107 : vector<1x256xf32>
      %111 = arith.addf %104, %110 : vector<1x256xf32>
      %c0_45 = arith.constant 0 : index
      %c80 = arith.constant 80 : index
      %112 = vector.load %arg6[%c0_45, %c80] : memref<1x512xf32, #tpu.memory_space<vmem>>, vector<1x256xf32>
      %c0_46 = arith.constant 0 : index
      %c3 = arith.constant 3 : index
      %113 = memref.load %arg2[%c0_46, %c3] : memref<7x7xf32, #tpu.memory_space<smem>>
      %114 = vector.broadcast %113 : f32 to vector<1x256xf32>
      %115 = arith.mulf %114, %112 : vector<1x256xf32>
      %116 = arith.addf %111, %115 : vector<1x256xf32>
      %c0_47 = arith.constant 0 : index
      %c81 = arith.constant 81 : index
      %117 = vector.load %arg6[%c0_47, %c81] : memref<1x512xf32, #tpu.memory_space<vmem>>, vector<1x256xf32>
      %cst_48 = arith.constant 0.000000e+00 : f32
      %118 = vector.broadcast %cst_48 : f32 to vector<1x256xf32>
      %119 = arith.select %69, %117, %118 : vector<1x256xi1>, vector<1x256xf32>
      %c0_49 = arith.constant 0 : index
      %c4 = arith.constant 4 : index
      %120 = memref.load %arg2[%c0_49, %c4] : memref<7x7xf32, #tpu.memory_space<smem>>
      %121 = vector.broadcast %120 : f32 to vector<1x256xf32>
      %122 = arith.mulf %121, %119 : vector<1x256xf32>
      %123 = arith.addf %116, %122 : vector<1x256xf32>
      %c0_50 = arith.constant 0 : index
      %c82 = arith.constant 82 : index
      %124 = vector.load %arg6[%c0_50, %c82] : memref<1x512xf32, #tpu.memory_space<vmem>>, vector<1x256xf32>
      %cst_51 = arith.constant 0.000000e+00 : f32
      %125 = vector.broadcast %cst_51 : f32 to vector<1x256xf32>
      %126 = arith.select %78, %124, %125 : vector<1x256xi1>, vector<1x256xf32>
      %c0_52 = arith.constant 0 : index
      %c5 = arith.constant 5 : index
      %127 = memref.load %arg2[%c0_52, %c5] : memref<7x7xf32, #tpu.memory_space<smem>>
      %128 = vector.broadcast %127 : f32 to vector<1x256xf32>
      %129 = arith.mulf %128, %126 : vector<1x256xf32>
      %130 = arith.addf %123, %129 : vector<1x256xf32>
      %c0_53 = arith.constant 0 : index
      %c83 = arith.constant 83 : index
      %131 = vector.load %arg6[%c0_53, %c83] : memref<1x512xf32, #tpu.memory_space<vmem>>, vector<1x256xf32>
      %cst_54 = arith.constant 0.000000e+00 : f32
      %132 = vector.broadcast %cst_54 : f32 to vector<1x256xf32>
      %133 = arith.select %87, %131, %132 : vector<1x256xi1>, vector<1x256xf32>
      %c0_55 = arith.constant 0 : index
      %c6 = arith.constant 6 : index
      %134 = memref.load %arg2[%c0_55, %c6] : memref<7x7xf32, #tpu.memory_space<smem>>
      %135 = vector.broadcast %134 : f32 to vector<1x256xf32>
      %136 = arith.mulf %135, %133 : vector<1x256xf32>
      %137 = arith.addf %130, %136 : vector<1x256xf32>
      %c0_56 = arith.constant 0 : index
      %c93 = arith.constant 93 : index
      %138 = vector.load %arg6[%c0_56, %c93] : memref<1x512xf32, #tpu.memory_space<vmem>>, vector<1x256xf32>
      %cst_57 = arith.constant 0.000000e+00 : f32
      %139 = vector.broadcast %cst_57 : f32 to vector<1x256xf32>
      %140 = arith.select %42, %138, %139 : vector<1x256xi1>, vector<1x256xf32>
      %c1_58 = arith.constant 1 : index
      %c0_59 = arith.constant 0 : index
      %141 = memref.load %arg2[%c1_58, %c0_59] : memref<7x7xf32, #tpu.memory_space<smem>>
      %142 = vector.broadcast %141 : f32 to vector<1x256xf32>
      %143 = arith.mulf %142, %140 : vector<1x256xf32>
      %144 = arith.addf %137, %143 : vector<1x256xf32>
      %c0_60 = arith.constant 0 : index
      %c94 = arith.constant 94 : index
      %145 = vector.load %arg6[%c0_60, %c94] : memref<1x512xf32, #tpu.memory_space<vmem>>, vector<1x256xf32>
      %cst_61 = arith.constant 0.000000e+00 : f32
      %146 = vector.broadcast %cst_61 : f32 to vector<1x256xf32>
      %147 = arith.select %51, %145, %146 : vector<1x256xi1>, vector<1x256xf32>
      %c1_62 = arith.constant 1 : index
      %c1_63 = arith.constant 1 : index
      %148 = memref.load %arg2[%c1_62, %c1_63] : memref<7x7xf32, #tpu.memory_space<smem>>
      %149 = vector.broadcast %148 : f32 to vector<1x256xf32>
      %150 = arith.mulf %149, %147 : vector<1x256xf32>
      %151 = arith.addf %144, %150 : vector<1x256xf32>
      %c0_64 = arith.constant 0 : index
      %c95 = arith.constant 95 : index
      %152 = vector.load %arg6[%c0_64, %c95] : memref<1x512xf32, #tpu.memory_space<vmem>>, vector<1x256xf32>
      %cst_65 = arith.constant 0.000000e+00 : f32
      %153 = vector.broadcast %cst_65 : f32 to vector<1x256xf32>
      %154 = arith.select %60, %152, %153 : vector<1x256xi1>, vector<1x256xf32>
      %c1_66 = arith.constant 1 : index
      %c2_67 = arith.constant 2 : index
      %155 = memref.load %arg2[%c1_66, %c2_67] : memref<7x7xf32, #tpu.memory_space<smem>>
      %156 = vector.broadcast %155 : f32 to vector<1x256xf32>
      %157 = arith.mulf %156, %154 : vector<1x256xf32>
      %158 = arith.addf %151, %157 : vector<1x256xf32>
      %c0_68 = arith.constant 0 : index
      %c96 = arith.constant 96 : index
      %159 = vector.load %arg6[%c0_68, %c96] : memref<1x512xf32, #tpu.memory_space<vmem>>, vector<1x256xf32>
      %c1_69 = arith.constant 1 : index
      %c3_70 = arith.constant 3 : index
      %160 = memref.load %arg2[%c1_69, %c3_70] : memref<7x7xf32, #tpu.memory_space<smem>>
      %161 = vector.broadcast %160 : f32 to vector<1x256xf32>
      %162 = arith.mulf %161, %159 : vector<1x256xf32>
      %163 = arith.addf %158, %162 : vector<1x256xf32>
      %c0_71 = arith.constant 0 : index
      %c97 = arith.constant 97 : index
      %164 = vector.load %arg6[%c0_71, %c97] : memref<1x512xf32, #tpu.memory_space<vmem>>, vector<1x256xf32>
      %cst_72 = arith.constant 0.000000e+00 : f32
      %165 = vector.broadcast %cst_72 : f32 to vector<1x256xf32>
      %166 = arith.select %69, %164, %165 : vector<1x256xi1>, vector<1x256xf32>
      %c1_73 = arith.constant 1 : index
      %c4_74 = arith.constant 4 : index
      %167 = memref.load %arg2[%c1_73, %c4_74] : memref<7x7xf32, #tpu.memory_space<smem>>
      %168 = vector.broadcast %167 : f32 to vector<1x256xf32>
      %169 = arith.mulf %168, %166 : vector<1x256xf32>
      %170 = arith.addf %163, %169 : vector<1x256xf32>
      %c0_75 = arith.constant 0 : index
      %c98 = arith.constant 98 : index
      %171 = vector.load %arg6[%c0_75, %c98] : memref<1x512xf32, #tpu.memory_space<vmem>>, vector<1x256xf32>
      %cst_76 = arith.constant 0.000000e+00 : f32
      %172 = vector.broadcast %cst_76 : f32 to vector<1x256xf32>
      %173 = arith.select %78, %171, %172 : vector<1x256xi1>, vector<1x256xf32>
      %c1_77 = arith.constant 1 : index
      %c5_78 = arith.constant 5 : index
      %174 = memref.load %arg2[%c1_77, %c5_78] : memref<7x7xf32, #tpu.memory_space<smem>>
      %175 = vector.broadcast %174 : f32 to vector<1x256xf32>
      %176 = arith.mulf %175, %173 : vector<1x256xf32>
      %177 = arith.addf %170, %176 : vector<1x256xf32>
      %c0_79 = arith.constant 0 : index
      %c99 = arith.constant 99 : index
      %178 = vector.load %arg6[%c0_79, %c99] : memref<1x512xf32, #tpu.memory_space<vmem>>, vector<1x256xf32>
      %cst_80 = arith.constant 0.000000e+00 : f32
      %179 = vector.broadcast %cst_80 : f32 to vector<1x256xf32>
      %180 = arith.select %87, %178, %179 : vector<1x256xi1>, vector<1x256xf32>
      %c1_81 = arith.constant 1 : index
      %c6_82 = arith.constant 6 : index
      %181 = memref.load %arg2[%c1_81, %c6_82] : memref<7x7xf32, #tpu.memory_space<smem>>
      %182 = vector.broadcast %181 : f32 to vector<1x256xf32>
      %183 = arith.mulf %182, %180 : vector<1x256xf32>
      %184 = arith.addf %177, %183 : vector<1x256xf32>
      %c0_83 = arith.constant 0 : index
      %c109 = arith.constant 109 : index
      %185 = vector.load %arg6[%c0_83, %c109] : memref<1x512xf32, #tpu.memory_space<vmem>>, vector<1x256xf32>
      %cst_84 = arith.constant 0.000000e+00 : f32
      %186 = vector.broadcast %cst_84 : f32 to vector<1x256xf32>
      %187 = arith.select %42, %185, %186 : vector<1x256xi1>, vector<1x256xf32>
      %c2_85 = arith.constant 2 : index
      %c0_86 = arith.constant 0 : index
      %188 = memref.load %arg2[%c2_85, %c0_86] : memref<7x7xf32, #tpu.memory_space<smem>>
      %189 = vector.broadcast %188 : f32 to vector<1x256xf32>
      %190 = arith.mulf %189, %187 : vector<1x256xf32>
      %191 = arith.addf %184, %190 : vector<1x256xf32>
      %c0_87 = arith.constant 0 : index
      %c110 = arith.constant 110 : index
      %192 = vector.load %arg6[%c0_87, %c110] : memref<1x512xf32, #tpu.memory_space<vmem>>, vector<1x256xf32>
      %cst_88 = arith.constant 0.000000e+00 : f32
      %193 = vector.broadcast %cst_88 : f32 to vector<1x256xf32>
      %194 = arith.select %51, %192, %193 : vector<1x256xi1>, vector<1x256xf32>
      %c2_89 = arith.constant 2 : index
      %c1_90 = arith.constant 1 : index
      %195 = memref.load %arg2[%c2_89, %c1_90] : memref<7x7xf32, #tpu.memory_space<smem>>
      %196 = vector.broadcast %195 : f32 to vector<1x256xf32>
      %197 = arith.mulf %196, %194 : vector<1x256xf32>
      %198 = arith.addf %191, %197 : vector<1x256xf32>
      %c0_91 = arith.constant 0 : index
      %c111 = arith.constant 111 : index
      %199 = vector.load %arg6[%c0_91, %c111] : memref<1x512xf32, #tpu.memory_space<vmem>>, vector<1x256xf32>
      %cst_92 = arith.constant 0.000000e+00 : f32
      %200 = vector.broadcast %cst_92 : f32 to vector<1x256xf32>
      %201 = arith.select %60, %199, %200 : vector<1x256xi1>, vector<1x256xf32>
      %c2_93 = arith.constant 2 : index
      %c2_94 = arith.constant 2 : index
      %202 = memref.load %arg2[%c2_93, %c2_94] : memref<7x7xf32, #tpu.memory_space<smem>>
      %203 = vector.broadcast %202 : f32 to vector<1x256xf32>
      %204 = arith.mulf %203, %201 : vector<1x256xf32>
      %205 = arith.addf %198, %204 : vector<1x256xf32>
      %c0_95 = arith.constant 0 : index
      %c112 = arith.constant 112 : index
      %206 = vector.load %arg6[%c0_95, %c112] : memref<1x512xf32, #tpu.memory_space<vmem>>, vector<1x256xf32>
      %c2_96 = arith.constant 2 : index
      %c3_97 = arith.constant 3 : index
      %207 = memref.load %arg2[%c2_96, %c3_97] : memref<7x7xf32, #tpu.memory_space<smem>>
      %208 = vector.broadcast %207 : f32 to vector<1x256xf32>
      %209 = arith.mulf %208, %206 : vector<1x256xf32>
      %210 = arith.addf %205, %209 : vector<1x256xf32>
      %c0_98 = arith.constant 0 : index
      %c113 = arith.constant 113 : index
      %211 = vector.load %arg6[%c0_98, %c113] : memref<1x512xf32, #tpu.memory_space<vmem>>, vector<1x256xf32>
      %cst_99 = arith.constant 0.000000e+00 : f32
      %212 = vector.broadcast %cst_99 : f32 to vector<1x256xf32>
      %213 = arith.select %69, %211, %212 : vector<1x256xi1>, vector<1x256xf32>
      %c2_100 = arith.constant 2 : index
      %c4_101 = arith.constant 4 : index
      %214 = memref.load %arg2[%c2_100, %c4_101] : memref<7x7xf32, #tpu.memory_space<smem>>
      %215 = vector.broadcast %214 : f32 to vector<1x256xf32>
      %216 = arith.mulf %215, %213 : vector<1x256xf32>
      %217 = arith.addf %210, %216 : vector<1x256xf32>
      %c0_102 = arith.constant 0 : index
      %c114 = arith.constant 114 : index
      %218 = vector.load %arg6[%c0_102, %c114] : memref<1x512xf32, #tpu.memory_space<vmem>>, vector<1x256xf32>
      %cst_103 = arith.constant 0.000000e+00 : f32
      %219 = vector.broadcast %cst_103 : f32 to vector<1x256xf32>
      %220 = arith.select %78, %218, %219 : vector<1x256xi1>, vector<1x256xf32>
      %c2_104 = arith.constant 2 : index
      %c5_105 = arith.constant 5 : index
      %221 = memref.load %arg2[%c2_104, %c5_105] : memref<7x7xf32, #tpu.memory_space<smem>>
      %222 = vector.broadcast %221 : f32 to vector<1x256xf32>
      %223 = arith.mulf %222, %220 : vector<1x256xf32>
      %224 = arith.addf %217, %223 : vector<1x256xf32>
      %c0_106 = arith.constant 0 : index
      %c115 = arith.constant 115 : index
      %225 = vector.load %arg6[%c0_106, %c115] : memref<1x512xf32, #tpu.memory_space<vmem>>, vector<1x256xf32>
      %cst_107 = arith.constant 0.000000e+00 : f32
      %226 = vector.broadcast %cst_107 : f32 to vector<1x256xf32>
      %227 = arith.select %87, %225, %226 : vector<1x256xi1>, vector<1x256xf32>
      %c2_108 = arith.constant 2 : index
      %c6_109 = arith.constant 6 : index
      %228 = memref.load %arg2[%c2_108, %c6_109] : memref<7x7xf32, #tpu.memory_space<smem>>
      %229 = vector.broadcast %228 : f32 to vector<1x256xf32>
      %230 = arith.mulf %229, %227 : vector<1x256xf32>
      %231 = arith.addf %224, %230 : vector<1x256xf32>
      %c0_110 = arith.constant 0 : index
      %c125 = arith.constant 125 : index
      %232 = vector.load %arg6[%c0_110, %c125] : memref<1x512xf32, #tpu.memory_space<vmem>>, vector<1x256xf32>
      %cst_111 = arith.constant 0.000000e+00 : f32
      %233 = vector.broadcast %cst_111 : f32 to vector<1x256xf32>
      %234 = arith.select %42, %232, %233 : vector<1x256xi1>, vector<1x256xf32>
      %c3_112 = arith.constant 3 : index
      %c0_113 = arith.constant 0 : index
      %235 = memref.load %arg2[%c3_112, %c0_113] : memref<7x7xf32, #tpu.memory_space<smem>>
      %236 = vector.broadcast %235 : f32 to vector<1x256xf32>
      %237 = arith.mulf %236, %234 : vector<1x256xf32>
      %238 = arith.addf %231, %237 : vector<1x256xf32>
      %c0_114 = arith.constant 0 : index
      %c126 = arith.constant 126 : index
      %239 = vector.load %arg6[%c0_114, %c126] : memref<1x512xf32, #tpu.memory_space<vmem>>, vector<1x256xf32>
      %cst_115 = arith.constant 0.000000e+00 : f32
      %240 = vector.broadcast %cst_115 : f32 to vector<1x256xf32>
      %241 = arith.select %51, %239, %240 : vector<1x256xi1>, vector<1x256xf32>
      %c3_116 = arith.constant 3 : index
      %c1_117 = arith.constant 1 : index
      %242 = memref.load %arg2[%c3_116, %c1_117] : memref<7x7xf32, #tpu.memory_space<smem>>
      %243 = vector.broadcast %242 : f32 to vector<1x256xf32>
      %244 = arith.mulf %243, %241 : vector<1x256xf32>
      %245 = arith.addf %238, %244 : vector<1x256xf32>
      %c0_118 = arith.constant 0 : index
      %c127 = arith.constant 127 : index
      %246 = vector.load %arg6[%c0_118, %c127] : memref<1x512xf32, #tpu.memory_space<vmem>>, vector<1x256xf32>
      %cst_119 = arith.constant 0.000000e+00 : f32
      %247 = vector.broadcast %cst_119 : f32 to vector<1x256xf32>
      %248 = arith.select %60, %246, %247 : vector<1x256xi1>, vector<1x256xf32>
      %c3_120 = arith.constant 3 : index
      %c2_121 = arith.constant 2 : index
      %249 = memref.load %arg2[%c3_120, %c2_121] : memref<7x7xf32, #tpu.memory_space<smem>>
      %250 = vector.broadcast %249 : f32 to vector<1x256xf32>
      %251 = arith.mulf %250, %248 : vector<1x256xf32>
      %252 = arith.addf %245, %251 : vector<1x256xf32>
      %c0_122 = arith.constant 0 : index
      %c128_123 = arith.constant 128 : index
      %253 = vector.load %arg6[%c0_122, %c128_123] : memref<1x512xf32, #tpu.memory_space<vmem>>, vector<1x256xf32>
      %c3_124 = arith.constant 3 : index
      %c3_125 = arith.constant 3 : index
      %254 = memref.load %arg2[%c3_124, %c3_125] : memref<7x7xf32, #tpu.memory_space<smem>>
      %255 = vector.broadcast %254 : f32 to vector<1x256xf32>
      %256 = arith.mulf %255, %253 : vector<1x256xf32>
      %257 = arith.addf %252, %256 : vector<1x256xf32>
      %c0_126 = arith.constant 0 : index
      %c129 = arith.constant 129 : index
      %258 = vector.load %arg6[%c0_126, %c129] : memref<1x512xf32, #tpu.memory_space<vmem>>, vector<1x256xf32>
      %cst_127 = arith.constant 0.000000e+00 : f32
      %259 = vector.broadcast %cst_127 : f32 to vector<1x256xf32>
      %260 = arith.select %69, %258, %259 : vector<1x256xi1>, vector<1x256xf32>
      %c3_128 = arith.constant 3 : index
      %c4_129 = arith.constant 4 : index
      %261 = memref.load %arg2[%c3_128, %c4_129] : memref<7x7xf32, #tpu.memory_space<smem>>
      %262 = vector.broadcast %261 : f32 to vector<1x256xf32>
      %263 = arith.mulf %262, %260 : vector<1x256xf32>
      %264 = arith.addf %257, %263 : vector<1x256xf32>
      %c0_130 = arith.constant 0 : index
      %c130 = arith.constant 130 : index
      %265 = vector.load %arg6[%c0_130, %c130] : memref<1x512xf32, #tpu.memory_space<vmem>>, vector<1x256xf32>
      %cst_131 = arith.constant 0.000000e+00 : f32
      %266 = vector.broadcast %cst_131 : f32 to vector<1x256xf32>
      %267 = arith.select %78, %265, %266 : vector<1x256xi1>, vector<1x256xf32>
      %c3_132 = arith.constant 3 : index
      %c5_133 = arith.constant 5 : index
      %268 = memref.load %arg2[%c3_132, %c5_133] : memref<7x7xf32, #tpu.memory_space<smem>>
      %269 = vector.broadcast %268 : f32 to vector<1x256xf32>
      %270 = arith.mulf %269, %267 : vector<1x256xf32>
      %271 = arith.addf %264, %270 : vector<1x256xf32>
      %c0_134 = arith.constant 0 : index
      %c131 = arith.constant 131 : index
      %272 = vector.load %arg6[%c0_134, %c131] : memref<1x512xf32, #tpu.memory_space<vmem>>, vector<1x256xf32>
      %cst_135 = arith.constant 0.000000e+00 : f32
      %273 = vector.broadcast %cst_135 : f32 to vector<1x256xf32>
      %274 = arith.select %87, %272, %273 : vector<1x256xi1>, vector<1x256xf32>
      %c3_136 = arith.constant 3 : index
      %c6_137 = arith.constant 6 : index
      %275 = memref.load %arg2[%c3_136, %c6_137] : memref<7x7xf32, #tpu.memory_space<smem>>
      %276 = vector.broadcast %275 : f32 to vector<1x256xf32>
      %277 = arith.mulf %276, %274 : vector<1x256xf32>
      %278 = arith.addf %271, %277 : vector<1x256xf32>
      %c0_138 = arith.constant 0 : index
      %c141 = arith.constant 141 : index
      %279 = vector.load %arg6[%c0_138, %c141] : memref<1x512xf32, #tpu.memory_space<vmem>>, vector<1x256xf32>
      %cst_139 = arith.constant 0.000000e+00 : f32
      %280 = vector.broadcast %cst_139 : f32 to vector<1x256xf32>
      %281 = arith.select %42, %279, %280 : vector<1x256xi1>, vector<1x256xf32>
      %c4_140 = arith.constant 4 : index
      %c0_141 = arith.constant 0 : index
      %282 = memref.load %arg2[%c4_140, %c0_141] : memref<7x7xf32, #tpu.memory_space<smem>>
      %283 = vector.broadcast %282 : f32 to vector<1x256xf32>
      %284 = arith.mulf %283, %281 : vector<1x256xf32>
      %285 = arith.addf %278, %284 : vector<1x256xf32>
      %c0_142 = arith.constant 0 : index
      %c142 = arith.constant 142 : index
      %286 = vector.load %arg6[%c0_142, %c142] : memref<1x512xf32, #tpu.memory_space<vmem>>, vector<1x256xf32>
      %cst_143 = arith.constant 0.000000e+00 : f32
      %287 = vector.broadcast %cst_143 : f32 to vector<1x256xf32>
      %288 = arith.select %51, %286, %287 : vector<1x256xi1>, vector<1x256xf32>
      %c4_144 = arith.constant 4 : index
      %c1_145 = arith.constant 1 : index
      %289 = memref.load %arg2[%c4_144, %c1_145] : memref<7x7xf32, #tpu.memory_space<smem>>
      %290 = vector.broadcast %289 : f32 to vector<1x256xf32>
      %291 = arith.mulf %290, %288 : vector<1x256xf32>
      %292 = arith.addf %285, %291 : vector<1x256xf32>
      %c0_146 = arith.constant 0 : index
      %c143 = arith.constant 143 : index
      %293 = vector.load %arg6[%c0_146, %c143] : memref<1x512xf32, #tpu.memory_space<vmem>>, vector<1x256xf32>
      %cst_147 = arith.constant 0.000000e+00 : f32
      %294 = vector.broadcast %cst_147 : f32 to vector<1x256xf32>
      %295 = arith.select %60, %293, %294 : vector<1x256xi1>, vector<1x256xf32>
      %c4_148 = arith.constant 4 : index
      %c2_149 = arith.constant 2 : index
      %296 = memref.load %arg2[%c4_148, %c2_149] : memref<7x7xf32, #tpu.memory_space<smem>>
      %297 = vector.broadcast %296 : f32 to vector<1x256xf32>
      %298 = arith.mulf %297, %295 : vector<1x256xf32>
      %299 = arith.addf %292, %298 : vector<1x256xf32>
      %c0_150 = arith.constant 0 : index
      %c144 = arith.constant 144 : index
      %300 = vector.load %arg6[%c0_150, %c144] : memref<1x512xf32, #tpu.memory_space<vmem>>, vector<1x256xf32>
      %c4_151 = arith.constant 4 : index
      %c3_152 = arith.constant 3 : index
      %301 = memref.load %arg2[%c4_151, %c3_152] : memref<7x7xf32, #tpu.memory_space<smem>>
      %302 = vector.broadcast %301 : f32 to vector<1x256xf32>
      %303 = arith.mulf %302, %300 : vector<1x256xf32>
      %304 = arith.addf %299, %303 : vector<1x256xf32>
      %c0_153 = arith.constant 0 : index
      %c145 = arith.constant 145 : index
      %305 = vector.load %arg6[%c0_153, %c145] : memref<1x512xf32, #tpu.memory_space<vmem>>, vector<1x256xf32>
      %cst_154 = arith.constant 0.000000e+00 : f32
      %306 = vector.broadcast %cst_154 : f32 to vector<1x256xf32>
      %307 = arith.select %69, %305, %306 : vector<1x256xi1>, vector<1x256xf32>
      %c4_155 = arith.constant 4 : index
      %c4_156 = arith.constant 4 : index
      %308 = memref.load %arg2[%c4_155, %c4_156] : memref<7x7xf32, #tpu.memory_space<smem>>
      %309 = vector.broadcast %308 : f32 to vector<1x256xf32>
      %310 = arith.mulf %309, %307 : vector<1x256xf32>
      %311 = arith.addf %304, %310 : vector<1x256xf32>
      %c0_157 = arith.constant 0 : index
      %c146 = arith.constant 146 : index
      %312 = vector.load %arg6[%c0_157, %c146] : memref<1x512xf32, #tpu.memory_space<vmem>>, vector<1x256xf32>
      %cst_158 = arith.constant 0.000000e+00 : f32
      %313 = vector.broadcast %cst_158 : f32 to vector<1x256xf32>
      %314 = arith.select %78, %312, %313 : vector<1x256xi1>, vector<1x256xf32>
      %c4_159 = arith.constant 4 : index
      %c5_160 = arith.constant 5 : index
      %315 = memref.load %arg2[%c4_159, %c5_160] : memref<7x7xf32, #tpu.memory_space<smem>>
      %316 = vector.broadcast %315 : f32 to vector<1x256xf32>
      %317 = arith.mulf %316, %314 : vector<1x256xf32>
      %318 = arith.addf %311, %317 : vector<1x256xf32>
      %c0_161 = arith.constant 0 : index
      %c147 = arith.constant 147 : index
      %319 = vector.load %arg6[%c0_161, %c147] : memref<1x512xf32, #tpu.memory_space<vmem>>, vector<1x256xf32>
      %cst_162 = arith.constant 0.000000e+00 : f32
      %320 = vector.broadcast %cst_162 : f32 to vector<1x256xf32>
      %321 = arith.select %87, %319, %320 : vector<1x256xi1>, vector<1x256xf32>
      %c4_163 = arith.constant 4 : index
      %c6_164 = arith.constant 6 : index
      %322 = memref.load %arg2[%c4_163, %c6_164] : memref<7x7xf32, #tpu.memory_space<smem>>
      %323 = vector.broadcast %322 : f32 to vector<1x256xf32>
      %324 = arith.mulf %323, %321 : vector<1x256xf32>
      %325 = arith.addf %318, %324 : vector<1x256xf32>
      %c0_165 = arith.constant 0 : index
      %c157 = arith.constant 157 : index
      %326 = vector.load %arg6[%c0_165, %c157] : memref<1x512xf32, #tpu.memory_space<vmem>>, vector<1x256xf32>
      %cst_166 = arith.constant 0.000000e+00 : f32
      %327 = vector.broadcast %cst_166 : f32 to vector<1x256xf32>
      %328 = arith.select %42, %326, %327 : vector<1x256xi1>, vector<1x256xf32>
      %c5_167 = arith.constant 5 : index
      %c0_168 = arith.constant 0 : index
      %329 = memref.load %arg2[%c5_167, %c0_168] : memref<7x7xf32, #tpu.memory_space<smem>>
      %330 = vector.broadcast %329 : f32 to vector<1x256xf32>
      %331 = arith.mulf %330, %328 : vector<1x256xf32>
      %332 = arith.addf %325, %331 : vector<1x256xf32>
      %c0_169 = arith.constant 0 : index
      %c158 = arith.constant 158 : index
      %333 = vector.load %arg6[%c0_169, %c158] : memref<1x512xf32, #tpu.memory_space<vmem>>, vector<1x256xf32>
      %cst_170 = arith.constant 0.000000e+00 : f32
      %334 = vector.broadcast %cst_170 : f32 to vector<1x256xf32>
      %335 = arith.select %51, %333, %334 : vector<1x256xi1>, vector<1x256xf32>
      %c5_171 = arith.constant 5 : index
      %c1_172 = arith.constant 1 : index
      %336 = memref.load %arg2[%c5_171, %c1_172] : memref<7x7xf32, #tpu.memory_space<smem>>
      %337 = vector.broadcast %336 : f32 to vector<1x256xf32>
      %338 = arith.mulf %337, %335 : vector<1x256xf32>
      %339 = arith.addf %332, %338 : vector<1x256xf32>
      %c0_173 = arith.constant 0 : index
      %c159 = arith.constant 159 : index
      %340 = vector.load %arg6[%c0_173, %c159] : memref<1x512xf32, #tpu.memory_space<vmem>>, vector<1x256xf32>
      %cst_174 = arith.constant 0.000000e+00 : f32
      %341 = vector.broadcast %cst_174 : f32 to vector<1x256xf32>
      %342 = arith.select %60, %340, %341 : vector<1x256xi1>, vector<1x256xf32>
      %c5_175 = arith.constant 5 : index
      %c2_176 = arith.constant 2 : index
      %343 = memref.load %arg2[%c5_175, %c2_176] : memref<7x7xf32, #tpu.memory_space<smem>>
      %344 = vector.broadcast %343 : f32 to vector<1x256xf32>
      %345 = arith.mulf %344, %342 : vector<1x256xf32>
      %346 = arith.addf %339, %345 : vector<1x256xf32>
      %c0_177 = arith.constant 0 : index
      %c160 = arith.constant 160 : index
      %347 = vector.load %arg6[%c0_177, %c160] : memref<1x512xf32, #tpu.memory_space<vmem>>, vector<1x256xf32>
      %c5_178 = arith.constant 5 : index
      %c3_179 = arith.constant 3 : index
      %348 = memref.load %arg2[%c5_178, %c3_179] : memref<7x7xf32, #tpu.memory_space<smem>>
      %349 = vector.broadcast %348 : f32 to vector<1x256xf32>
      %350 = arith.mulf %349, %347 : vector<1x256xf32>
      %351 = arith.addf %346, %350 : vector<1x256xf32>
      %c0_180 = arith.constant 0 : index
      %c161 = arith.constant 161 : index
      %352 = vector.load %arg6[%c0_180, %c161] : memref<1x512xf32, #tpu.memory_space<vmem>>, vector<1x256xf32>
      %cst_181 = arith.constant 0.000000e+00 : f32
      %353 = vector.broadcast %cst_181 : f32 to vector<1x256xf32>
      %354 = arith.select %69, %352, %353 : vector<1x256xi1>, vector<1x256xf32>
      %c5_182 = arith.constant 5 : index
      %c4_183 = arith.constant 4 : index
      %355 = memref.load %arg2[%c5_182, %c4_183] : memref<7x7xf32, #tpu.memory_space<smem>>
      %356 = vector.broadcast %355 : f32 to vector<1x256xf32>
      %357 = arith.mulf %356, %354 : vector<1x256xf32>
      %358 = arith.addf %351, %357 : vector<1x256xf32>
      %c0_184 = arith.constant 0 : index
      %c162 = arith.constant 162 : index
      %359 = vector.load %arg6[%c0_184, %c162] : memref<1x512xf32, #tpu.memory_space<vmem>>, vector<1x256xf32>
      %cst_185 = arith.constant 0.000000e+00 : f32
      %360 = vector.broadcast %cst_185 : f32 to vector<1x256xf32>
      %361 = arith.select %78, %359, %360 : vector<1x256xi1>, vector<1x256xf32>
      %c5_186 = arith.constant 5 : index
      %c5_187 = arith.constant 5 : index
      %362 = memref.load %arg2[%c5_186, %c5_187] : memref<7x7xf32, #tpu.memory_space<smem>>
      %363 = vector.broadcast %362 : f32 to vector<1x256xf32>
      %364 = arith.mulf %363, %361 : vector<1x256xf32>
      %365 = arith.addf %358, %364 : vector<1x256xf32>
      %c0_188 = arith.constant 0 : index
      %c163 = arith.constant 163 : index
      %366 = vector.load %arg6[%c0_188, %c163] : memref<1x512xf32, #tpu.memory_space<vmem>>, vector<1x256xf32>
      %cst_189 = arith.constant 0.000000e+00 : f32
      %367 = vector.broadcast %cst_189 : f32 to vector<1x256xf32>
      %368 = arith.select %87, %366, %367 : vector<1x256xi1>, vector<1x256xf32>
      %c5_190 = arith.constant 5 : index
      %c6_191 = arith.constant 6 : index
      %369 = memref.load %arg2[%c5_190, %c6_191] : memref<7x7xf32, #tpu.memory_space<smem>>
      %370 = vector.broadcast %369 : f32 to vector<1x256xf32>
      %371 = arith.mulf %370, %368 : vector<1x256xf32>
      %372 = arith.addf %365, %371 : vector<1x256xf32>
      %c0_192 = arith.constant 0 : index
      %c173 = arith.constant 173 : index
      %373 = vector.load %arg6[%c0_192, %c173] : memref<1x512xf32, #tpu.memory_space<vmem>>, vector<1x256xf32>
      %cst_193 = arith.constant 0.000000e+00 : f32
      %374 = vector.broadcast %cst_193 : f32 to vector<1x256xf32>
      %375 = arith.select %42, %373, %374 : vector<1x256xi1>, vector<1x256xf32>
      %c6_194 = arith.constant 6 : index
      %c0_195 = arith.constant 0 : index
      %376 = memref.load %arg2[%c6_194, %c0_195] : memref<7x7xf32, #tpu.memory_space<smem>>
      %377 = vector.broadcast %376 : f32 to vector<1x256xf32>
      %378 = arith.mulf %377, %375 : vector<1x256xf32>
      %379 = arith.addf %372, %378 : vector<1x256xf32>
      %c0_196 = arith.constant 0 : index
      %c174 = arith.constant 174 : index
      %380 = vector.load %arg6[%c0_196, %c174] : memref<1x512xf32, #tpu.memory_space<vmem>>, vector<1x256xf32>
      %cst_197 = arith.constant 0.000000e+00 : f32
      %381 = vector.broadcast %cst_197 : f32 to vector<1x256xf32>
      %382 = arith.select %51, %380, %381 : vector<1x256xi1>, vector<1x256xf32>
      %c6_198 = arith.constant 6 : index
      %c1_199 = arith.constant 1 : index
      %383 = memref.load %arg2[%c6_198, %c1_199] : memref<7x7xf32, #tpu.memory_space<smem>>
      %384 = vector.broadcast %383 : f32 to vector<1x256xf32>
      %385 = arith.mulf %384, %382 : vector<1x256xf32>
      %386 = arith.addf %379, %385 : vector<1x256xf32>
      %c0_200 = arith.constant 0 : index
      %c175 = arith.constant 175 : index
      %387 = vector.load %arg6[%c0_200, %c175] : memref<1x512xf32, #tpu.memory_space<vmem>>, vector<1x256xf32>
      %cst_201 = arith.constant 0.000000e+00 : f32
      %388 = vector.broadcast %cst_201 : f32 to vector<1x256xf32>
      %389 = arith.select %60, %387, %388 : vector<1x256xi1>, vector<1x256xf32>
      %c6_202 = arith.constant 6 : index
      %c2_203 = arith.constant 2 : index
      %390 = memref.load %arg2[%c6_202, %c2_203] : memref<7x7xf32, #tpu.memory_space<smem>>
      %391 = vector.broadcast %390 : f32 to vector<1x256xf32>
      %392 = arith.mulf %391, %389 : vector<1x256xf32>
      %393 = arith.addf %386, %392 : vector<1x256xf32>
      %c0_204 = arith.constant 0 : index
      %c176 = arith.constant 176 : index
      %394 = vector.load %arg6[%c0_204, %c176] : memref<1x512xf32, #tpu.memory_space<vmem>>, vector<1x256xf32>
      %c6_205 = arith.constant 6 : index
      %c3_206 = arith.constant 3 : index
      %395 = memref.load %arg2[%c6_205, %c3_206] : memref<7x7xf32, #tpu.memory_space<smem>>
      %396 = vector.broadcast %395 : f32 to vector<1x256xf32>
      %397 = arith.mulf %396, %394 : vector<1x256xf32>
      %398 = arith.addf %393, %397 : vector<1x256xf32>
      %c0_207 = arith.constant 0 : index
      %c177 = arith.constant 177 : index
      %399 = vector.load %arg6[%c0_207, %c177] : memref<1x512xf32, #tpu.memory_space<vmem>>, vector<1x256xf32>
      %cst_208 = arith.constant 0.000000e+00 : f32
      %400 = vector.broadcast %cst_208 : f32 to vector<1x256xf32>
      %401 = arith.select %69, %399, %400 : vector<1x256xi1>, vector<1x256xf32>
      %c6_209 = arith.constant 6 : index
      %c4_210 = arith.constant 4 : index
      %402 = memref.load %arg2[%c6_209, %c4_210] : memref<7x7xf32, #tpu.memory_space<smem>>
      %403 = vector.broadcast %402 : f32 to vector<1x256xf32>
      %404 = arith.mulf %403, %401 : vector<1x256xf32>
      %405 = arith.addf %398, %404 : vector<1x256xf32>
      %c0_211 = arith.constant 0 : index
      %c178 = arith.constant 178 : index
      %406 = vector.load %arg6[%c0_211, %c178] : memref<1x512xf32, #tpu.memory_space<vmem>>, vector<1x256xf32>
      %cst_212 = arith.constant 0.000000e+00 : f32
      %407 = vector.broadcast %cst_212 : f32 to vector<1x256xf32>
      %408 = arith.select %78, %406, %407 : vector<1x256xi1>, vector<1x256xf32>
      %c6_213 = arith.constant 6 : index
      %c5_214 = arith.constant 5 : index
      %409 = memref.load %arg2[%c6_213, %c5_214] : memref<7x7xf32, #tpu.memory_space<smem>>
      %410 = vector.broadcast %409 : f32 to vector<1x256xf32>
      %411 = arith.mulf %410, %408 : vector<1x256xf32>
      %412 = arith.addf %405, %411 : vector<1x256xf32>
      %c0_215 = arith.constant 0 : index
      %c179 = arith.constant 179 : index
      %413 = vector.load %arg6[%c0_215, %c179] : memref<1x512xf32, #tpu.memory_space<vmem>>, vector<1x256xf32>
      %cst_216 = arith.constant 0.000000e+00 : f32
      %414 = vector.broadcast %cst_216 : f32 to vector<1x256xf32>
      %415 = arith.select %87, %413, %414 : vector<1x256xi1>, vector<1x256xf32>
      %c6_217 = arith.constant 6 : index
      %c6_218 = arith.constant 6 : index
      %416 = memref.load %arg2[%c6_217, %c6_218] : memref<7x7xf32, #tpu.memory_space<smem>>
      %417 = vector.broadcast %416 : f32 to vector<1x256xf32>
      %418 = arith.mulf %417, %415 : vector<1x256xf32>
      %419 = arith.addf %412, %418 : vector<1x256xf32>
      %420 = arith.negf %419 : vector<1x256xf32>
      %421 = math.exp %420 : vector<1x256xf32>
      %cst_219 = arith.constant 1.000000e+00 : f32
      %422 = vector.broadcast %cst_219 : f32 to vector<1x256xf32>
      %423 = arith.addf %422, %421 : vector<1x256xf32>
      %424 = arith.divf %422, %423 : vector<1x256xf32>
      %c0_220 = arith.constant 0 : index
      %c0_221 = arith.constant 0 : index
      %c0_222 = arith.constant 0 : index
      %425 = vector.load %arg4[%c0_220, %c0_221, %c0_222] : memref<1x1x256xf32, #tpu.memory_space<vmem>>, vector<1x1x256xf32>
      %426 = vector.shape_cast %425 : vector<1x1x256xf32> to vector<1x256xf32>
      %427 = vector.shape_cast %424 : vector<1x256xf32> to vector<1x1x256xf32>
      tpu.vector_store %arg4[%c0_220, %c0_221, %c0_222], %427 {strides = array<i32>} : memref<1x1x256xf32, #tpu.memory_space<vmem>>, vector<1x1x256xf32>,
    } else {
    }
    return
  }
  func.func @transform_0(%arg0: i32, %arg1: i32) -> (i32, i32) {
    %c0_i32 = arith.constant 0 : i32
    %c0_i32_0 = arith.constant 0 : i32
    %c0_i32_1 = arith.constant 0 : i32
    return %c0_i32, %c0_i32_0 : i32, i32
  }
  func.func @transform_1(%arg0: i32, %arg1: i32) -> (i32, i32, i32) {
    %c0_i32 = arith.constant 0 : i32
    %c0_i32_0 = arith.constant 0 : i32
    return %arg0, %arg1, %c0_i32 : i32, i32, i32
  }
  func.func @transform_2(%arg0: i32, %arg1: i32) -> (i32, i32, i32) {
    %c0_i32 = arith.constant 0 : i32
    %c0_i32_0 = arith.constant 0 : i32
    %c0_i32_1 = arith.constant 0 : i32
    return %arg0, %c0_i32, %c0_i32_0 : i32, i32, i32
  }
}

</mosaic_0001>

<llo_original>
// kernel: tpu_custom_call.1
$region0: #{tpu_custom_call.1}
  #allocation0 [shape = 'u32[]', space=smem, size = 0x4, offset = 0x4, fixed_abs, tag = 'smem constant byte address 0x4 - core index']
  #allocation1 [shape = 'u32[72,128]{1,0:T(1,128)}', space=vmem, size = 0x9000, scoped, tag = 'internal scratch']
  #allocation2 [shape = 'f32[1,256]{1,0:T(1,128)}', space=vmem, size = 0x400, scoped, tag = 'scratch operand']
  #allocation3 [shape = 'f32[1,512]{1,0:T(1,128)}', space=vmem, size = 0x800, scoped, tag = 'scratch operand']
  %s0 = inlined_call_operand.hbm [shape: f32[7,7], index: 0, kind: input, shape index: {}]
  %s1 = inlined_call_operand.hbm [shape: f32[2,4,256], index: 1, kind: input, shape index: {}]
  %s2 = inlined_call_operand.hbm [shape: f32[2,1,256], index: 2, kind: output, shape index: {}]
  %s3 = sld [smem:[#allocation0]]
  $region57: #{tpu_custom_call.1} parent=0
    _
  %s5 = ssub.s32 1, %s3
  %s6 = scalar_select 0, %s5, %s3
  $region1: #{tpu_custom_call.1} parent=0
    #allocation4 [shape = 'u8[4096]{0}', space=smem, size = 0x1000, scoped, tag = 'input window, operand 0, single buffered']
    #allocation5 [shape = 's32[2]{0}', space=sflag, size = 0x8, scoped, tag = 'scoped memory for tpu_custom_call.1']
    #allocation6 [shape = 's32[2]{0}', space=sflag, size = 0x8, scoped, tag = 'scoped memory for tpu_custom_call.1']
    #allocation7 [shape = 's32[2]{0}', space=sflag, size = 0x8, scoped, tag = 'scoped memory for tpu_custom_call.1']
    #allocation8 [shape = 'u8[8192]{0}', space=vmem, size = 0x2000, scoped, tag = 'input window, operand 1']
    #allocation9 [shape = 'u8[2048]{0}', space=vmem, size = 0x800, scoped, tag = 'output window, operand 0']
    %7 = vsyncpa [#allocation7], 0
    %8 = vsyncpa [#allocation5], 0
    %s9 = scalar_lea.sflag [#allocation5], 1
    %10 = vsyncpa %s9, 0
    %11 = vsyncpa [#allocation6], 0
    %s12 = scalar_lea.sflag [#allocation6], 1
    %13 = vsyncpa %s12, 0
    loop: start=0, step=1, limit=4
    $region2: #{tpu_custom_call.1} parent=1 // loop_pre_header
      _
    $region3: #{tpu_custom_call.1} parent=1 // loop_header
      %s15 = sphi 0, %s19
      %p16 = scmp.ge.s32.totalorder %s15, 4
      %s22 = sphi 0, %s34
      %s23 = sphi 0, %s30
      %s24 = sphi 0, %s22
      %s25 = sphi 0, %s23
      %s26 = sphi 0, %s24
      %s27 = sphi 0, %s25
      %s35 = sphi 0, %s35
      %s37 = sphi 0, %s35
      %s38 = sphi 0, %s37
      %s52 = sphi 0, %s38
      %s60 = sphi 0, %s62
      %s63 = sphi 0, %s60
      %s64 = sphi 0, %s63
      %s80 = sphi 0, %s64
      %s86 = sphi 0, %s88
      %s89 = sphi 0, %s86
      %s90 = sphi 0, %s89
      %s106 = sphi 0, %s90
    $region4: #{tpu_custom_call.1} parent=1 // loop_header_branch
      %18 = sbr.rel (%p16) target = $region8
    $region5: #{tpu_custom_call.1} parent=1 // loop_body
      %s20 = ssub.s32 %s15, 1
      %s21 = ssub.s32 %s15, 2
      %s28 = sadd.s32 1, %s23
      %p29 = scmp.ge.s32.totalorder %s28, 1
      %s30 = scalar_select %p29, 0, %s28
      %s31 = sadd.s32 1, %s22
      %s32 = scalar_select %p29, %s31, %s22
      %p33 = scmp.ge.s32.totalorder %s32, 2
      %s34 = scalar_select %p33, 0, %s32
      %s36 = sadd.s32 %s35, 1
      %p39 = scmp.eq.s32.totalorder %s15, 1
      %p40 = scmp.ne.s32.totalorder %s35, %s37
      %p41 = scmp.eq.s32.totalorder %s15, 0
      %p42 = por %p40, %p41
      %p43 = scmp.ne.s32.totalorder %s35, %s37
      %p44 = scmp.eq.s32.totalorder %s20, 1
      %p45 = por %p43, %p44
      %p46 = scmp.ne.s32.totalorder %s37, %s38
      %p47 = scmp.eq.s32.totalorder %s20, 0
      %p48 = por %p46, %p47
      %p49 = scmp.ne.s32.totalorder %s37, %s38
      %p50 = scmp.eq.s32.totalorder %s21, 1
      %p51 = por %p49, %p50
      %p53 = scmp.ne.s32.totalorder %s38, %s52
      %p54 = scmp.eq.s32.totalorder %s21, 0
      %p55 = por %p53, %p54
      %s56 = ssub.s32 %s22, %s34
      %s57 = ssub.s32 %s23, %s30
      %s58 = sor.u32 %s56, %s57
      %p59 = scmp.eq.s32.totalorder %s58, 0
      %s61 = sadd.s32 %s60, 1
      %s62 = scalar_select %p59, %s60, %s61
      %p65 = pneg %p59
      %p66 = scmp.eq.s32.totalorder %s15, 1
      %p67 = por %p65, %p66
      %p68 = scmp.ne.s32.totalorder %s60, %s63
      %p69 = scmp.eq.s32.totalorder %s15, 0
      %p70 = por %p68, %p69
      %p71 = scmp.ne.s32.totalorder %s60, %s63
      %p72 = scmp.eq.s32.totalorder %s20, 1
      %p73 = por %p71, %p72
      %p74 = scmp.ne.s32.totalorder %s63, %s64
      %p75 = scmp.eq.s32.totalorder %s20, 0
      %p76 = por %p74, %p75
      %p77 = scmp.ne.s32.totalorder %s63, %s64
      %p78 = scmp.eq.s32.totalorder %s21, 1
      %p79 = por %p77, %p78
      %p81 = scmp.ne.s32.totalorder %s64, %s80
      %p82 = scmp.eq.s32.totalorder %s21, 0
      %p83 = por %p81, %p82
      %s84 = ssub.s32 %s22, %s34
      %p85 = scmp.eq.s32.totalorder %s84, 0
      %s87 = sadd.s32 %s86, 1
      %s88 = scalar_select %p85, %s86, %s87
      %p91 = pneg %p85
      %p92 = scmp.eq.s32.totalorder %s15, 1
      %p93 = por %p91, %p92
      %p94 = scmp.ne.s32.totalorder %s86, %s89
      %p95 = scmp.eq.s32.totalorder %s15, 0
      %p96 = por %p94, %p95
      %p97 = scmp.ne.s32.totalorder %s86, %s89
      %p98 = scmp.eq.s32.totalorder %s20, 1
      %p99 = por %p97, %p98
      %p100 = scmp.ne.s32.totalorder %s89, %s90
      %p101 = scmp.eq.s32.totalorder %s20, 0
      %p102 = por %p100, %p101
      %p103 = scmp.ne.s32.totalorder %s89, %s90
      %p104 = scmp.eq.s32.totalorder %s21, 1
      %p105 = por %p103, %p104
      %p107 = scmp.ne.s32.totalorder %s90, %s106
      %p108 = scmp.eq.s32.totalorder %s21, 0
      %p109 = por %p107, %p108
      %p110 = scmp.le.s32.totalorder 1, %s15
      %p111 = scmp.lt.s32.totalorder %s15, 3
      %p112 = pnand %p110, %p111
      %p113 = pneg %p112
      // Predicated region
      $region9: #{tpu_custom_call.1} parent=5 // pred_check
        _
      $region10: #{tpu_custom_call.1} parent=5 // pred_check_branch
        %115 = sbr.rel (%p112) target = $region12
      $region11: #{tpu_custom_call.1} parent=5 // pred_region
        %s116 = ssub.s32 %s15, 1
        // Predicated region
        $region13: #{tpu_custom_call.1} parent=11 // pred_check
          %p117 = pneg %p48
        $region14: #{tpu_custom_call.1} parent=11 // pred_check_branch
          %119 = sbr.rel (%p117) target = $region16
        $region15: #{tpu_custom_call.1} parent=11 // pred_region
          %121 = vsyncadd [#allocation7], 0
          %s123 = sshll.u32 %s0, 4
          %s124 = int_to_ptr.hbm [resolvable:$true] %s123
          %126 = dma.hbm_to_smem %s124, 128, [#allocation4], [#allocation7]
        $region16: #{tpu_custom_call.1} parent=11 // pred_fallthru
          _
      $region12: #{tpu_custom_call.1} parent=5 // pred_fallthru
        _
      %p127 = scmp.lt.s32.totalorder %s15, 2
      // Predicated region
      $region17: #{tpu_custom_call.1} parent=5 // pred_check
        %p128 = pneg %p127
      $region18: #{tpu_custom_call.1} parent=5 // pred_check_branch
        %130 = sbr.rel (%p128) target = $region20
      $region19: #{tpu_custom_call.1} parent=5 // pred_region
        // Predicated region
        $region21: #{tpu_custom_call.1} parent=19 // pred_check
          %p131 = pneg %p70
        $region22: #{tpu_custom_call.1} parent=19 // pred_check_branch
          %133 = sbr.rel (%p131) target = $region24
        $region23: #{tpu_custom_call.1} parent=19 // pred_region
          %s134 = sand.u32 %s60, 1
          %s135 = scalar_lea.sflag [#allocation5], %s134
          %s136 = sand.u32 %s60, 1
          %s137 = smul.addr %s136, 8
          %s138 = scalar_lea.vmem [#allocation8], %s137
          %140 = vsyncadd %s135, 0
          %s141 = smul.addr %s23, 2
          %s142 = smul.addr %s22, 2
          %s143 = sadd.s32 %s141, %s142
          %s144 = smul.addr %s143, 4
          %s145 = scalar_lea.hbm %s1, %s144
          %s147 = sshll.u32 %s145, 4
          %s148 = int_to_ptr.hbm [resolvable:$true] %s147
          %s149 = sshll.u32 %s138, 4
          %s150 = int_to_ptr.vmem [resolvable:$true] %s149
          %152 = dma.hbm_to_vmem [thread:$0]  %s148, 128, %s150, %s135
        $region24: #{tpu_custom_call.1} parent=19 // pred_fallthru
          _
      $region20: #{tpu_custom_call.1} parent=5 // pred_fallthru
        _
      %p153 = scmp.le.s32.totalorder 1, %s15
      %p154 = scmp.lt.s32.totalorder %s15, 3
      %p155 = pnand %p153, %p154
      %p156 = pneg %p155
      // Predicated region
      $region25: #{tpu_custom_call.1} parent=5 // pred_check
        _
      $region26: #{tpu_custom_call.1} parent=5 // pred_check_branch
        %158 = sbr.rel (%p155) target = $region28
      $region27: #{tpu_custom_call.1} parent=5 // pred_region
        %s159 = ssub.s32 %s15, 1
        // Predicated region
        $region29: #{tpu_custom_call.1} parent=27 // pred_check
          %p160 = pneg %p48
        $region30: #{tpu_custom_call.1} parent=27 // pred_check_branch
          %162 = sbr.rel (%p160) target = $region32
        $region31: #{tpu_custom_call.1} parent=27 // pred_region
          %164 = dma.done [#allocation7], 128
        $region32: #{tpu_custom_call.1} parent=27 // pred_fallthru
          _
        %s165 = sand.u32 %s63, 1
        %s166 = scalar_lea.sflag [#allocation5], %s165
        %s167 = sand.u32 %s63, 1
        %s168 = smul.addr %s167, 8
        %s169 = scalar_lea.vmem [#allocation8], %s168
        // Predicated region
        $region33: #{tpu_custom_call.1} parent=27 // pred_check
          %p170 = pneg %p76
        $region34: #{tpu_custom_call.1} parent=27 // pred_check_branch
          %172 = sbr.rel (%p170) target = $region36
        $region35: #{tpu_custom_call.1} parent=27 // pred_region
          %174 = dma.done %s166, 128
        $region36: #{tpu_custom_call.1} parent=27 // pred_fallthru
          _
        %175 = sfence
        %p176 = pneg %p48
        %p177 = pneg %p45
        %s178 = sand.u32 %s63, 1
        %s179 = scalar_lea.sflag [#allocation5], %s178
        %s180 = sand.u32 %s63, 1
        %s181 = smul.addr %s180, 8
        %s182 = scalar_lea.vmem [#allocation8], %s181
        %p183 = pneg %p76
        %p184 = pneg %p73
        %p185 = pneg %p102
        %p186 = pneg %p99
        %s187 = sand.u32 %s89, 1
        %s188 = scalar_lea.sflag [#allocation6], %s187
        %s189 = sand.u32 %s89, 1
        %s190 = smul.addr %s189, 2
        %s191 = scalar_lea.vmem [#allocation9], %s190
        %p192 = scmp.eq.s32.totalorder %s25, 0
        // Predicated region
        $region37: #{tpu_custom_call.1} parent=27 // pred_check
          %p193 = pneg %p192
        $region38: #{tpu_custom_call.1} parent=27 // pred_check_branch
          %195 = sbr.rel (%p193) target = $region40
        $region39: #{tpu_custom_call.1} parent=27 // pred_region
          %v196 = vlaneseq
          %vm197 = vcmp.ge.s32.totalorder %v196, 0
          %vm198 = vcmp.lt.s32.totalorder %v196, 256
          %vm199 = vmand %vm197, %vm198
          %200 = vst.msk [vmem:[#allocation2] sm:$0x3] %vm199, -inf
          %vm201 = vcmp.lt.s32.totalorder %v196, 512
          %vm202 = vmand %vm197, %vm201
          %203 = vst.msk [vmem:[#allocation3] sm:$0xf] %vm202, 0.0
        $region40: #{tpu_custom_call.1} parent=27 // pred_fallthru
          _
        %v204 = vld [vmem:[%s169] sm:$0xff]
        %v206 = vrot.slane %v204, 6
        %v207 = vrot.slane %v206, 4
        %v209 = vmax.f32 %v204, %v207
        %v211 = vrot.slane %v209, 5
        %v212 = vrot.slane %v211, 4
        %v214 = vmax.f32 %v209, %v212
        %v215 = vld [vmem:[#allocation2] sm:$0x3]
        %v217 = vrot.slane %v214, 3
        %vm218 = vcmask 1040384
        %v219 = vsel %vm218, %v214, %v217
        %v221 = vmax.f32 %v215, %v219
        %v222 = vlaneseq
        %vm223 = vcmp.ge.s32.totalorder %v222, 0
        %vm224 = vcmp.lt.s32.totalorder %v222, 256
        %vm225 = vmand %vm223, %vm224
        %226 = vst.msk [vmem:[#allocation2] sm:$0x3] %vm225, %v221
        // Predicated region
        $region41: #{tpu_custom_call.1} parent=27 // pred_check
          %p227 = pneg %p192
        $region42: #{tpu_custom_call.1} parent=27 // pred_check_branch
          %229 = sbr.rel (%p227) target = $region44
        $region43: #{tpu_custom_call.1} parent=27 // pred_region
          %v230 = vlaneseq
          %v231 = vand.u32 %v230, 127
          %v232 = vadd.s32 %v231, 128
          %vm233 = vcmp.lt.s32.totalorder %v231, 0
          %v234 = vsub.s32 0, %v231
          %v235 = vsel %vm233, %v234, %v231
          %v236 = vshrl.u32 %v235, 4
          %v237 = vand.u32 %v235, 15
          %v238 = vsub.s32 0, %v237
          %v239 = vsel %vm233, %v238, %v237
          %vm240 = vcmp.lt.s32.totalorder %v232, 0
          %v241 = vsub.s32 0, %v232
          %v242 = vsel %vm240, %v241, %v232
          %v243 = vshrl.u32 %v242, 4
          %v244 = vand.u32 %v242, 15
          %v245 = vsub.s32 0, %v244
          %v246 = vsel %vm240, %v245, %v244
          %vm247 = vcmp.ne.s32.totalorder %v239, 0
          %vm248 = vcmp.ne.s32.totalorder %v246, 0
          %vm249 = vcmp.lt.s32.totalorder %v239, 0
          %vm250 = vcmp.lt.s32.totalorder %v246, 0
          %vm251 = vmand %vm249, %vm247
          %vm252 = vmand %vm250, %vm248
          %v253 = vadd.s32 %v239, 16
          %v254 = vadd.s32 %v246, 16
          %v255 = vsel %vm251, %v253, %v239
          %v256 = vsel %vm252, %v254, %v246
          %v257 = vadd.s32 %v255, 4294967293
          %v258 = vadd.s32 %v256, 4294967293
          %vm259 = vcmp.ge.s32.totalorder %v257, 0
          %vm260 = vcmp.ge.s32.totalorder %v258, 0
          %vm261 = vcmp.lt.s32.totalorder %v257, 16
          %vm262 = vcmp.lt.s32.totalorder %v258, 16
          %vm263 = vmand %vm259, %vm261
          %vm264 = vmand %vm260, %vm262
          %v265 = vadd.s32 %v255, 4294967294
          %v266 = vadd.s32 %v256, 4294967294
          %vm267 = vcmp.ge.s32.totalorder %v265, 0
          %vm268 = vcmp.ge.s32.totalorder %v266, 0
          %vm269 = vcmp.lt.s32.totalorder %v265, 16
          %vm270 = vcmp.lt.s32.totalorder %v266, 16
          %vm271 = vmand %vm267, %vm269
          %vm272 = vmand %vm268, %vm270
          %v273 = vadd.s32 %v255, 4294967295
          %v274 = vadd.s32 %v256, 4294967295
          %vm275 = vcmp.ge.s32.totalorder %v273, 0
          %vm276 = vcmp.ge.s32.totalorder %v274, 0
          %vm277 = vcmp.lt.s32.totalorder %v273, 16
          %vm278 = vcmp.lt.s32.totalorder %v274, 16
          %vm279 = vmand %vm275, %vm277
          %vm280 = vmand %vm276, %vm278
          %v281 = vadd.s32 %v255, 1
          %v282 = vadd.s32 %v256, 1
          %vm283 = vcmp.ge.s32.totalorder %v281, 0
          %vm284 = vcmp.ge.s32.totalorder %v282, 0
          %vm285 = vcmp.lt.s32.totalorder %v281, 16
          %vm286 = vcmp.lt.s32.totalorder %v282, 16
          %vm287 = vmand %vm283, %vm285
          %vm288 = vmand %vm284, %vm286
          %v289 = vadd.s32 %v255, 2
          %v290 = vadd.s32 %v256, 2
          %vm291 = vcmp.ge.s32.totalorder %v289, 0
          %vm292 = vcmp.ge.s32.totalorder %v290, 0
          %vm293 = vcmp.lt.s32.totalorder %v289, 16
          %vm294 = vcmp.lt.s32.totalorder %v290, 16
          %vm295 = vmand %vm291, %vm293
          %vm296 = vmand %vm292, %vm294
          %v297 = vadd.s32 %v255, 3
          %v298 = vadd.s32 %v256, 3
          %vm299 = vcmp.ge.s32.totalorder %v297, 0
          %vm300 = vcmp.ge.s32.totalorder %v298, 0
          %vm301 = vcmp.lt.s32.totalorder %v297, 16
          %vm302 = vcmp.lt.s32.totalorder %v298, 16
          %vm303 = vmand %vm299, %vm301
          %vm304 = vmand %vm300, %vm302
          %v305 = vld [vmem:[#allocation2] sm:$0x3]
          %306 = vst.msk [vmem:[#allocation3 + $0x1] sm:$0x3] %vm225, %v305
          %v307 = vld [vmem:[#allocation3] sm:$0x7]
          %v309 = vperm.slane %v307, 0
          %v310 = vperm.slane %v307, 1
          %v311 = vperm.slane %v307, 2
          %312 = vrot.lane.b32.xlu0 %v309, 51
          %v313 = vpop.permute.xlu0 %312
          %314 = vrot.lane.b32.xlu0 %v310, 51
          %v315 = vpop.permute.xlu0 %314
          %316 = vrot.lane.b32.xlu0 %v311, 51
          %v317 = vpop.permute.xlu0 %316
          %vm318 = vcmask 416768
          %v319 = vsel %vm318, %v313, %v315
          %v320 = vsel %vm318, %v315, %v317
          %v323 = vsel %vm263, %v319, 0.0
          %v324 = vsel %vm264, %v320, 0.0
          %s325 = sld [smem:[#allocation4]]
          %v326 = vstv %s325
          %v327 = vmul.f32 %v326, %v323
          %v328 = vmul.f32 %v326, %v324
          %v329 = vadd.f32 %v327, 0.0
          %v330 = vadd.f32 %v328, 0.0
          %331 = vrot.lane.b32.xlu0 %v309, 50
          %v332 = vpop.permute.xlu0 %331
          %333 = vrot.lane.b32.xlu0 %v310, 50
          %v334 = vpop.permute.xlu0 %333
          %335 = vrot.lane.b32.xlu0 %v311, 50
          %v336 = vpop.permute.xlu0 %335
          %vm337 = vcmask 408576
          %v338 = vsel %vm337, %v332, %v334
          %v339 = vsel %vm337, %v334, %v336
          %v342 = vsel %vm271, %v338, 0.0
          %v343 = vsel %vm272, %v339, 0.0
          %s344 = sld [smem:[#allocation4 + $0x1]]
          %v345 = vstv %s344
          %v346 = vmul.f32 %v345, %v342
          %v347 = vmul.f32 %v345, %v343
          %v348 = vadd.f32 %v329, %v346
          %v349 = vadd.f32 %v330, %v347
          %350 = vrot.lane.b32.xlu0 %v309, 49
          %v351 = vpop.permute.xlu0 %350
          %352 = vrot.lane.b32.xlu0 %v310, 49
          %v353 = vpop.permute.xlu0 %352
          %354 = vrot.lane.b32.xlu0 %v311, 49
          %v355 = vpop.permute.xlu0 %354
          %vm356 = vcmask 400384
          %v357 = vsel %vm356, %v351, %v353
          %v358 = vsel %vm356, %v353, %v355
          %v361 = vsel %vm279, %v357, 0.0
          %v362 = vsel %vm280, %v358, 0.0
          %s363 = sld [smem:[#allocation4 + $0x2]]
          %v364 = vstv %s363
          %v365 = vmul.f32 %v364, %v361
          %v366 = vmul.f32 %v364, %v362
          %v367 = vadd.f32 %v348, %v365
          %v368 = vadd.f32 %v349, %v366
          %s369 = sld [smem:[#allocation4 + $0x3]]
          %v370 = vstv %s369
          %v371 = vmul.f32 %v370, %v307
          %v373 = vperm.slane %v371, 0
          %v374 = vperm.slane %v371, 1
          %v375 = vperm.slane %v371, 2
          %376 = vrot.lane.b32.xlu0 %v373, 48
          %v377 = vpop.permute.xlu0 %376
          %378 = vrot.lane.b32.xlu0 %v374, 48
          %v379 = vpop.permute.xlu0 %378
          %380 = vrot.lane.b32.xlu0 %v375, 48
          %v381 = vpop.permute.xlu0 %380
          %vm382 = vcmask 392192
          %v383 = vsel %vm382, %v377, %v379
          %v384 = vsel %vm382, %v379, %v381
          %v387 = vadd.f32 %v367, %v383
          %v388 = vadd.f32 %v368, %v384
          %389 = vrot.lane.b32.xlu0 %v309, 47
          %v390 = vpop.permute.xlu0 %389
          %391 = vrot.lane.b32.xlu0 %v310, 47
          %v392 = vpop.permute.xlu0 %391
          %393 = vrot.lane.b32.xlu0 %v311, 47
          %v394 = vpop.permute.xlu0 %393
          %vm395 = vcmask 384000
          %v396 = vsel %vm395, %v390, %v392
          %v397 = vsel %vm395, %v392, %v394
          %v400 = vsel %vm287, %v396, 0.0
          %v401 = vsel %vm288, %v397, 0.0
          %s402 = sld [smem:[#allocation4 + $0x4]]
          %v403 = vstv %s402
          %v404 = vmul.f32 %v403, %v400
          %v405 = vmul.f32 %v403, %v401
          %v406 = vadd.f32 %v387, %v404
          %v407 = vadd.f32 %v388, %v405
          %408 = vrot.lane.b32.xlu0 %v309, 46
          %v409 = vpop.permute.xlu0 %408
          %410 = vrot.lane.b32.xlu0 %v310, 46
          %v411 = vpop.permute.xlu0 %410
          %412 = vrot.lane.b32.xlu0 %v311, 46
          %v413 = vpop.permute.xlu0 %412
          %vm414 = vcmask 375808
          %v415 = vsel %vm414, %v409, %v411
          %v416 = vsel %vm414, %v411, %v413
          %v419 = vsel %vm295, %v415, 0.0
          %v420 = vsel %vm296, %v416, 0.0
          %s421 = sld [smem:[#allocation4 + $0x5]]
          %v422 = vstv %s421
          %v423 = vmul.f32 %v422, %v419
          %v424 = vmul.f32 %v422, %v420
          %v425 = vadd.f32 %v406, %v423
          %v426 = vadd.f32 %v407, %v424
          %427 = vrot.lane.b32.xlu0 %v309, 45
          %v428 = vpop.permute.xlu0 %427
          %429 = vrot.lane.b32.xlu0 %v310, 45
          %v430 = vpop.permute.xlu0 %429
          %431 = vrot.lane.b32.xlu0 %v311, 45
          %v432 = vpop.permute.xlu0 %431
          %vm433 = vcmask 367616
          %v434 = vsel %vm433, %v428, %v430
          %v435 = vsel %vm433, %v430, %v432
          %v438 = vsel %vm303, %v434, 0.0
          %v439 = vsel %vm304, %v435, 0.0
          %s440 = sld [smem:[#allocation4 + $0x6]]
          %v441 = vstv %s440
          %v442 = vmul.f32 %v441, %v438
          %v443 = vmul.f32 %v441, %v439
          %v444 = vadd.f32 %v425, %v442
          %v445 = vadd.f32 %v426, %v443
          %446 = vrot.lane.b32.xlu0 %v309, 35
          %v447 = vpop.permute.xlu0 %446
          %448 = vrot.lane.b32.xlu0 %v310, 35
          %v449 = vpop.permute.xlu0 %448
          %450 = vrot.lane.b32.xlu0 %v311, 35
          %v451 = vpop.permute.xlu0 %450
          %vm452 = vcmask 285696
          %v453 = vsel %vm452, %v447, %v449
          %v454 = vsel %vm452, %v449, %v451
          %v457 = vsel %vm263, %v453, 0.0
          %v458 = vsel %vm264, %v454, 0.0
          %s459 = sld [smem:[#allocation4 + $0x80]]
          %v460 = vstv %s459
          %v461 = vmul.f32 %v460, %v457
          %v462 = vmul.f32 %v460, %v458
          %v463 = vadd.f32 %v444, %v461
          %v464 = vadd.f32 %v445, %v462
          %465 = vrot.lane.b32.xlu0 %v309, 34
          %v466 = vpop.permute.xlu0 %465
          %467 = vrot.lane.b32.xlu0 %v310, 34
          %v468 = vpop.permute.xlu0 %467
          %469 = vrot.lane.b32.xlu0 %v311, 34
          %v470 = vpop.permute.xlu0 %469
          %vm471 = vcmask 277504
          %v472 = vsel %vm471, %v466, %v468
          %v473 = vsel %vm471, %v468, %v470
          %v476 = vsel %vm271, %v472, 0.0
          %v477 = vsel %vm272, %v473, 0.0
          %s478 = sld [smem:[#allocation4 + $0x81]]
          %v479 = vstv %s478
          %v480 = vmul.f32 %v479, %v476
          %v481 = vmul.f32 %v479, %v477
          %v482 = vadd.f32 %v463, %v480
          %v483 = vadd.f32 %v464, %v481
          %484 = vrot.lane.b32.xlu0 %v309, 33
          %v485 = vpop.permute.xlu0 %484
          %486 = vrot.lane.b32.xlu0 %v310, 33
          %v487 = vpop.permute.xlu0 %486
          %488 = vrot.lane.b32.xlu0 %v311, 33
          %v489 = vpop.permute.xlu0 %488
          %vm490 = vcmask 269312
          %v491 = vsel %vm490, %v485, %v487
          %v492 = vsel %vm490, %v487, %v489
          %v495 = vsel %vm279, %v491, 0.0
          %v496 = vsel %vm280, %v492, 0.0
          %s497 = sld [smem:[#allocation4 + $0x82]]
          %v498 = vstv %s497
          %v499 = vmul.f32 %v498, %v495
          %v500 = vmul.f32 %v498, %v496
          %v501 = vadd.f32 %v482, %v499
          %v502 = vadd.f32 %v483, %v500
          %s503 = sld [smem:[#allocation4 + $0x83]]
          %v504 = vstv %s503
          %v505 = vmul.f32 %v504, %v307
          %v507 = vperm.slane %v505, 0
          %v508 = vperm.slane %v505, 1
          %v509 = vperm.slane %v505, 2
          %510 = vrot.lane.b32.xlu0 %v507, 32
          %v511 = vpop.permute.xlu0 %510
          %512 = vrot.lane.b32.xlu0 %v508, 32
          %v513 = vpop.permute.xlu0 %512
          %514 = vrot.lane.b32.xlu0 %v509, 32
          %v515 = vpop.permute.xlu0 %514
          %vm516 = vcmask 261120
          %v517 = vsel %vm516, %v511, %v513
          %v518 = vsel %vm516, %v513, %v515
          %v521 = vadd.f32 %v501, %v517
          %v522 = vadd.f32 %v502, %v518
          %523 = vrot.lane.b32.xlu0 %v309, 31
          %v524 = vpop.permute.xlu0 %523
          %525 = vrot.lane.b32.xlu0 %v310, 31
          %v526 = vpop.permute.xlu0 %525
          %527 = vrot.lane.b32.xlu0 %v311, 31
          %v528 = vpop.permute.xlu0 %527
          %vm529 = vcmask 252928
          %v530 = vsel %vm529, %v524, %v526
          %v531 = vsel %vm529, %v526, %v528
          %v534 = vsel %vm287, %v530, 0.0
          %v535 = vsel %vm288, %v531, 0.0
          %s536 = sld [smem:[#allocation4 + $0x84]]
          %v537 = vstv %s536
          %v538 = vmul.f32 %v537, %v534
          %v539 = vmul.f32 %v537, %v535
          %v540 = vadd.f32 %v521, %v538
          %v541 = vadd.f32 %v522, %v539
          %542 = vrot.lane.b32.xlu0 %v309, 30
          %v543 = vpop.permute.xlu0 %542
          %544 = vrot.lane.b32.xlu0 %v310, 30
          %v545 = vpop.permute.xlu0 %544
          %546 = vrot.lane.b32.xlu0 %v311, 30
          %v547 = vpop.permute.xlu0 %546
          %vm548 = vcmask 244736
          %v549 = vsel %vm548, %v543, %v545
          %v550 = vsel %vm548, %v545, %v547
          %v553 = vsel %vm295, %v549, 0.0
          %v554 = vsel %vm296, %v550, 0.0
          %s555 = sld [smem:[#allocation4 + $0x85]]
          %v556 = vstv %s555
          %v557 = vmul.f32 %v556, %v553
          %v558 = vmul.f32 %v556, %v554
          %v559 = vadd.f32 %v540, %v557
          %v560 = vadd.f32 %v541, %v558
          %561 = vrot.lane.b32.xlu0 %v309, 29
          %v562 = vpop.permute.xlu0 %561
          %563 = vrot.lane.b32.xlu0 %v310, 29
          %v564 = vpop.permute.xlu0 %563
          %565 = vrot.lane.b32.xlu0 %v311, 29
          %v566 = vpop.permute.xlu0 %565
          %vm567 = vcmask 236544
          %v568 = vsel %vm567, %v562, %v564
          %v569 = vsel %vm567, %v564, %v566
          %v572 = vsel %vm303, %v568, 0.0
          %v573 = vsel %vm304, %v569, 0.0
          %s574 = sld [smem:[#allocation4 + $0x86]]
          %v575 = vstv %s574
          %v576 = vmul.f32 %v575, %v572
          %v577 = vmul.f32 %v575, %v573
          %v578 = vadd.f32 %v559, %v576
          %v579 = vadd.f32 %v560, %v577
          %580 = vrot.lane.b32.xlu0 %v309, 19
          %v581 = vpop.permute.xlu0 %580
          %582 = vrot.lane.b32.xlu0 %v310, 19
          %v583 = vpop.permute.xlu0 %582
          %584 = vrot.lane.b32.xlu0 %v311, 19
          %v585 = vpop.permute.xlu0 %584
          %vm586 = vcmask 154624
          %v587 = vsel %vm586, %v581, %v583
          %v588 = vsel %vm586, %v583, %v585
          %v591 = vsel %vm263, %v587, 0.0
          %v592 = vsel %vm264, %v588, 0.0
          %s593 = sld [smem:[#allocation4 + $0x100]]
          %v594 = vstv %s593
          %v595 = vmul.f32 %v594, %v591
          %v596 = vmul.f32 %v594, %v592
          %v597 = vadd.f32 %v578, %v595
          %v598 = vadd.f32 %v579, %v596
          %599 = vrot.lane.b32.xlu0 %v309, 18
          %v600 = vpop.permute.xlu0 %599
          %601 = vrot.lane.b32.xlu0 %v310, 18
          %v602 = vpop.permute.xlu0 %601
          %603 = vrot.lane.b32.xlu0 %v311, 18
          %v604 = vpop.permute.xlu0 %603
          %vm605 = vcmask 146432
          %v606 = vsel %vm605, %v600, %v602
          %v607 = vsel %vm605, %v602, %v604
          %v610 = vsel %vm271, %v606, 0.0
          %v611 = vsel %vm272, %v607, 0.0
          %s612 = sld [smem:[#allocation4 + $0x101]]
          %v613 = vstv %s612
          %v614 = vmul.f32 %v613, %v610
          %v615 = vmul.f32 %v613, %v611
          %v616 = vadd.f32 %v597, %v614
          %v617 = vadd.f32 %v598, %v615
          %618 = vrot.lane.b32.xlu0 %v309, 17
          %v619 = vpop.permute.xlu0 %618
          %620 = vrot.lane.b32.xlu0 %v310, 17
          %v621 = vpop.permute.xlu0 %620
          %622 = vrot.lane.b32.xlu0 %v311, 17
          %v623 = vpop.permute.xlu0 %622
          %vm624 = vcmask 138240
          %v625 = vsel %vm624, %v619, %v621
          %v626 = vsel %vm624, %v621, %v623
          %v629 = vsel %vm279, %v625, 0.0
          %v630 = vsel %vm280, %v626, 0.0
          %s631 = sld [smem:[#allocation4 + $0x102]]
          %v632 = vstv %s631
          %v633 = vmul.f32 %v632, %v629
          %v634 = vmul.f32 %v632, %v630
          %v635 = vadd.f32 %v616, %v633
          %v636 = vadd.f32 %v617, %v634
          %s637 = sld [smem:[#allocation4 + $0x103]]
          %v638 = vstv %s637
          %v639 = vmul.f32 %v638, %v307
          %v641 = vperm.slane %v639, 0
          %v642 = vperm.slane %v639, 1
          %v643 = vperm.slane %v639, 2
          %644 = vrot.lane.b32.xlu0 %v641, 16
          %v645 = vpop.permute.xlu0 %644
          %646 = vrot.lane.b32.xlu0 %v642, 16
          %v647 = vpop.permute.xlu0 %646
          %648 = vrot.lane.b32.xlu0 %v643, 16
          %v649 = vpop.permute.xlu0 %648
          %vm650 = vcmask 130048
          %v651 = vsel %vm650, %v645, %v647
          %v652 = vsel %vm650, %v647, %v649
          %v655 = vadd.f32 %v635, %v651
          %v656 = vadd.f32 %v636, %v652
          %657 = vrot.lane.b32.xlu0 %v309, 15
          %v658 = vpop.permute.xlu0 %657
          %659 = vrot.lane.b32.xlu0 %v310, 15
          %v660 = vpop.permute.xlu0 %659
          %661 = vrot.lane.b32.xlu0 %v311, 15
          %v662 = vpop.permute.xlu0 %661
          %vm663 = vcmask 121856
          %v664 = vsel %vm663, %v658, %v660
          %v665 = vsel %vm663, %v660, %v662
          %v668 = vsel %vm287, %v664, 0.0
          %v669 = vsel %vm288, %v665, 0.0
          %s670 = sld [smem:[#allocation4 + $0x104]]
          %v671 = vstv %s670
          %v672 = vmul.f32 %v671, %v668
          %v673 = vmul.f32 %v671, %v669
          %v674 = vadd.f32 %v655, %v672
          %v675 = vadd.f32 %v656, %v673
          %676 = vrot.lane.b32.xlu0 %v309, 14
          %v677 = vpop.permute.xlu0 %676
          %678 = vrot.lane.b32.xlu0 %v310, 14
          %v679 = vpop.permute.xlu0 %678
          %680 = vrot.lane.b32.xlu0 %v311, 14
          %v681 = vpop.permute.xlu0 %680
          %vm682 = vcmask 113664
          %v683 = vsel %vm682, %v677, %v679
          %v684 = vsel %vm682, %v679, %v681
          %v687 = vsel %vm295, %v683, 0.0
          %v688 = vsel %vm296, %v684, 0.0
          %s689 = sld [smem:[#allocation4 + $0x105]]
          %v690 = vstv %s689
          %v691 = vmul.f32 %v690, %v687
          %v692 = vmul.f32 %v690, %v688
          %v693 = vadd.f32 %v674, %v691
          %v694 = vadd.f32 %v675, %v692
          %695 = vrot.lane.b32.xlu0 %v309, 13
          %v696 = vpop.permute.xlu0 %695
          %697 = vrot.lane.b32.xlu0 %v310, 13
          %v698 = vpop.permute.xlu0 %697
          %699 = vrot.lane.b32.xlu0 %v311, 13
          %v700 = vpop.permute.xlu0 %699
          %vm701 = vcmask 105472
          %v702 = vsel %vm701, %v696, %v698
          %v703 = vsel %vm701, %v698, %v700
          %v706 = vsel %vm303, %v702, 0.0
          %v707 = vsel %vm304, %v703, 0.0
          %s708 = sld [smem:[#allocation4 + $0x106]]
          %v709 = vstv %s708
          %v710 = vmul.f32 %v709, %v706
          %v711 = vmul.f32 %v709, %v707
          %v712 = vadd.f32 %v693, %v710
          %v713 = vadd.f32 %v694, %v711
          %714 = vrot.lane.b32.xlu0 %v309, 3
          %v715 = vpop.permute.xlu0 %714
          %716 = vrot.lane.b32.xlu0 %v310, 3
          %v717 = vpop.permute.xlu0 %716
          %718 = vrot.lane.b32.xlu0 %v311, 3
          %v719 = vpop.permute.xlu0 %718
          %vm720 = vcmask 23552
          %v721 = vsel %vm720, %v715, %v717
          %v722 = vsel %vm720, %v717, %v719
          %v725 = vsel %vm263, %v721, 0.0
          %v726 = vsel %vm264, %v722, 0.0
          %s727 = sld [smem:[#allocation4 + $0x180]]
          %v728 = vstv %s727
          %v729 = vmul.f32 %v728, %v725
          %v730 = vmul.f32 %v728, %v726
          %v731 = vadd.f32 %v712, %v729
          %v732 = vadd.f32 %v713, %v730
          %733 = vrot.lane.b32.xlu0 %v309, 2
          %v734 = vpop.permute.xlu0 %733
          %735 = vrot.lane.b32.xlu0 %v310, 2
          %v736 = vpop.permute.xlu0 %735
          %737 = vrot.lane.b32.xlu0 %v311, 2
          %v738 = vpop.permute.xlu0 %737
          %vm739 = vcmask 15360
          %v740 = vsel %vm739, %v734, %v736
          %v741 = vsel %vm739, %v736, %v738
          %v744 = vsel %vm271, %v740, 0.0
          %v745 = vsel %vm272, %v741, 0.0
          %s746 = sld [smem:[#allocation4 + $0x181]]
          %v747 = vstv %s746
          %v748 = vmul.f32 %v747, %v744
          %v749 = vmul.f32 %v747, %v745
          %v750 = vadd.f32 %v731, %v748
          %v751 = vadd.f32 %v732, %v749
          %752 = vrot.lane.b32.xlu0 %v309, 1
          %v753 = vpop.permute.xlu0 %752
          %754 = vrot.lane.b32.xlu0 %v310, 1
          %v755 = vpop.permute.xlu0 %754
          %756 = vrot.lane.b32.xlu0 %v311, 1
          %v757 = vpop.permute.xlu0 %756
          %vm758 = vcmask 7168
          %v759 = vsel %vm758, %v753, %v755
          %v760 = vsel %vm758, %v755, %v757
          %v763 = vsel %vm279, %v759, 0.0
          %v764 = vsel %vm280, %v760, 0.0
          %s765 = sld [smem:[#allocation4 + $0x182]]
          %v766 = vstv %s765
          %v767 = vmul.f32 %v766, %v763
          %v768 = vmul.f32 %v766, %v764
          %v769 = vadd.f32 %v750, %v767
          %v770 = vadd.f32 %v751, %v768
          %v771 = vld [vmem:[#allocation3 + $0x1] sm:$0x3]
          %s772 = sld [smem:[#allocation4 + $0x183]]
          %v773 = vstv %s772
          %v774 = vmul.f32 %v773, %v771
          %v776 = vperm.slane %v774, 0
          %v777 = vperm.slane %v774, 1
          %v780 = vadd.f32 %v769, %v776
          %v781 = vadd.f32 %v770, %v777
          %v782 = vld [vmem:[#allocation3 + $0x1] sm:$0x7]
          %v784 = vperm.slane %v782, 0
          %v785 = vperm.slane %v782, 1
          %v786 = vperm.slane %v782, 2
          %787 = vrot.lane.b32.xlu0 %v784, 127
          %v788 = vpop.permute.xlu0 %787
          %789 = vrot.lane.b32.xlu0 %v785, 127
          %v790 = vpop.permute.xlu0 %789
          %791 = vrot.lane.b32.xlu0 %v786, 127
          %v792 = vpop.permute.xlu0 %791
          %vm793 = vcmask 1039360
          %v794 = vsel %vm793, %v788, %v790
          %v795 = vsel %vm793, %v790, %v792
          %v798 = vsel %vm287, %v794, 0.0
          %v799 = vsel %vm288, %v795, 0.0
          %s800 = sld [smem:[#allocation4 + $0x184]]
          %v801 = vstv %s800
          %v802 = vmul.f32 %v801, %v798
          %v803 = vmul.f32 %v801, %v799
          %v804 = vadd.f32 %v780, %v802
          %v805 = vadd.f32 %v781, %v803
          %806 = vrot.lane.b32.xlu0 %v784, 126
          %v807 = vpop.permute.xlu0 %806
          %808 = vrot.lane.b32.xlu0 %v785, 126
          %v809 = vpop.permute.xlu0 %808
          %810 = vrot.lane.b32.xlu0 %v786, 126
          %v811 = vpop.permute.xlu0 %810
          %vm812 = vcmask 1031168
          %v813 = vsel %vm812, %v807, %v809
          %v814 = vsel %vm812, %v809, %v811
          %v817 = vsel %vm295, %v813, 0.0
          %v818 = vsel %vm296, %v814, 0.0
          %s819 = sld [smem:[#allocation4 + $0x185]]
          %v820 = vstv %s819
          %v821 = vmul.f32 %v820, %v817
          %v822 = vmul.f32 %v820, %v818
          %v823 = vadd.f32 %v804, %v821
          %v824 = vadd.f32 %v805, %v822
          %825 = vrot.lane.b32.xlu0 %v784, 125
          %v826 = vpop.permute.xlu0 %825
          %827 = vrot.lane.b32.xlu0 %v785, 125
          %v828 = vpop.permute.xlu0 %827
          %829 = vrot.lane.b32.xlu0 %v786, 125
          %v830 = vpop.permute.xlu0 %829
          %vm831 = vcmask 1022976
          %v832 = vsel %vm831, %v826, %v828
          %v833 = vsel %vm831, %v828, %v830
          %v836 = vsel %vm303, %v832, 0.0
          %v837 = vsel %vm304, %v833, 0.0
          %s838 = sld [smem:[#allocation4 + $0x186]]
          %v839 = vstv %s838
          %v840 = vmul.f32 %v839, %v836
          %v841 = vmul.f32 %v839, %v837
          %v842 = vadd.f32 %v823, %v840
          %v843 = vadd.f32 %v824, %v841
          %844 = vrot.lane.b32.xlu0 %v784, 115
          %v845 = vpop.permute.xlu0 %844
          %846 = vrot.lane.b32.xlu0 %v785, 115
          %v847 = vpop.permute.xlu0 %846
          %848 = vrot.lane.b32.xlu0 %v786, 115
          %v849 = vpop.permute.xlu0 %848
          %vm850 = vcmask 941056
          %v851 = vsel %vm850, %v845, %v847
          %v852 = vsel %vm850, %v847, %v849
          %v855 = vsel %vm263, %v851, 0.0
          %v856 = vsel %vm264, %v852, 0.0
          %s857 = sld [smem:[#allocation4 + $0x200]]
          %v858 = vstv %s857
          %v859 = vmul.f32 %v858, %v855
          %v860 = vmul.f32 %v858, %v856
          %v861 = vadd.f32 %v842, %v859
          %v862 = vadd.f32 %v843, %v860
          %863 = vrot.lane.b32.xlu0 %v784, 114
          %v864 = vpop.permute.xlu0 %863
          %865 = vrot.lane.b32.xlu0 %v785, 114
          %v866 = vpop.permute.xlu0 %865
          %867 = vrot.lane.b32.xlu0 %v786, 114
          %v868 = vpop.permute.xlu0 %867
          %vm869 = vcmask 932864
          %v870 = vsel %vm869, %v864, %v866
          %v871 = vsel %vm869, %v866, %v868
          %v874 = vsel %vm271, %v870, 0.0
          %v875 = vsel %vm272, %v871, 0.0
          %s876 = sld [smem:[#allocation4 + $0x201]]
          %v877 = vstv %s876
          %v878 = vmul.f32 %v877, %v874
          %v879 = vmul.f32 %v877, %v875
          %v880 = vadd.f32 %v861, %v878
          %v881 = vadd.f32 %v862, %v879
          %882 = vrot.lane.b32.xlu0 %v784, 113
          %v883 = vpop.permute.xlu0 %882
          %884 = vrot.lane.b32.xlu0 %v785, 113
          %v885 = vpop.permute.xlu0 %884
          %886 = vrot.lane.b32.xlu0 %v786, 113
          %v887 = vpop.permute.xlu0 %886
          %vm888 = vcmask 924672
          %v889 = vsel %vm888, %v883, %v885
          %v890 = vsel %vm888, %v885, %v887
          %v893 = vsel %vm279, %v889, 0.0
          %v894 = vsel %vm280, %v890, 0.0
          %s895 = sld [smem:[#allocation4 + $0x202]]
          %v896 = vstv %s895
          %v897 = vmul.f32 %v896, %v893
          %v898 = vmul.f32 %v896, %v894
          %v899 = vadd.f32 %v880, %v897
          %v900 = vadd.f32 %v881, %v898
          %s901 = sld [smem:[#allocation4 + $0x203]]
          %v902 = vstv %s901
          %v903 = vmul.f32 %v902, %v782
          %v905 = vperm.slane %v903, 0
          %v906 = vperm.slane %v903, 1
          %v907 = vperm.slane %v903, 2
          %908 = vrot.lane.b32.xlu0 %v905, 112
          %v909 = vpop.permute.xlu0 %908
          %910 = vrot.lane.b32.xlu0 %v906, 112
          %v911 = vpop.permute.xlu0 %910
          %912 = vrot.lane.b32.xlu0 %v907, 112
          %v913 = vpop.permute.xlu0 %912
          %vm914 = vcmask 916480
          %v915 = vsel %vm914, %v909, %v911
          %v916 = vsel %vm914, %v911, %v913
          %v919 = vadd.f32 %v899, %v915
          %v920 = vadd.f32 %v900, %v916
          %921 = vrot.lane.b32.xlu0 %v784, 111
          %v922 = vpop.permute.xlu0 %921
          %923 = vrot.lane.b32.xlu0 %v785, 111
          %v924 = vpop.permute.xlu0 %923
          %925 = vrot.lane.b32.xlu0 %v786, 111
          %v926 = vpop.permute.xlu0 %925
          %vm927 = vcmask 908288
          %v928 = vsel %vm927, %v922, %v924
          %v929 = vsel %vm927, %v924, %v926
          %v932 = vsel %vm287, %v928, 0.0
          %v933 = vsel %vm288, %v929, 0.0
          %s934 = sld [smem:[#allocation4 + $0x204]]
          %v935 = vstv %s934
          %v936 = vmul.f32 %v935, %v932
          %v937 = vmul.f32 %v935, %v933
          %v938 = vadd.f32 %v919, %v936
          %v939 = vadd.f32 %v920, %v937
          %940 = vrot.lane.b32.xlu0 %v784, 110
          %v941 = vpop.permute.xlu0 %940
          %942 = vrot.lane.b32.xlu0 %v785, 110
          %v943 = vpop.permute.xlu0 %942
          %944 = vrot.lane.b32.xlu0 %v786, 110
          %v945 = vpop.permute.xlu0 %944
          %vm946 = vcmask 900096
          %v947 = vsel %vm946, %v941, %v943
          %v948 = vsel %vm946, %v943, %v945
          %v951 = vsel %vm295, %v947, 0.0
          %v952 = vsel %vm296, %v948, 0.0
          %s953 = sld [smem:[#allocation4 + $0x205]]
          %v954 = vstv %s953
          %v955 = vmul.f32 %v954, %v951
          %v956 = vmul.f32 %v954, %v952
          %v957 = vadd.f32 %v938, %v955
          %v958 = vadd.f32 %v939, %v956
          %959 = vrot.lane.b32.xlu0 %v784, 109
          %v960 = vpop.permute.xlu0 %959
          %961 = vrot.lane.b32.xlu0 %v785, 109
          %v962 = vpop.permute.xlu0 %961
          %963 = vrot.lane.b32.xlu0 %v786, 109
          %v964 = vpop.permute.xlu0 %963
          %vm965 = vcmask 891904
          %v966 = vsel %vm965, %v960, %v962
          %v967 = vsel %vm965, %v962, %v964
          %v970 = vsel %vm303, %v966, 0.0
          %v971 = vsel %vm304, %v967, 0.0
          %s972 = sld [smem:[#allocation4 + $0x206]]
          %v973 = vstv %s972
          %v974 = vmul.f32 %v973, %v970
          %v975 = vmul.f32 %v973, %v971
          %v976 = vadd.f32 %v957, %v974
          %v977 = vadd.f32 %v958, %v975
          %978 = vrot.lane.b32.xlu0 %v784, 99
          %v979 = vpop.permute.xlu0 %978
          %980 = vrot.lane.b32.xlu0 %v785, 99
          %v981 = vpop.permute.xlu0 %980
          %982 = vrot.lane.b32.xlu0 %v786, 99
          %v983 = vpop.permute.xlu0 %982
          %vm984 = vcmask 809984
          %v985 = vsel %vm984, %v979, %v981
          %v986 = vsel %vm984, %v981, %v983
          %v989 = vsel %vm263, %v985, 0.0
          %v990 = vsel %vm264, %v986, 0.0
          %s991 = sld [smem:[#allocation4 + $0x280]]
          %v992 = vstv %s991
          %v993 = vmul.f32 %v992, %v989
          %v994 = vmul.f32 %v992, %v990
          %v995 = vadd.f32 %v976, %v993
          %v996 = vadd.f32 %v977, %v994
          %997 = vrot.lane.b32.xlu0 %v784, 98
          %v998 = vpop.permute.xlu0 %997
          %999 = vrot.lane.b32.xlu0 %v785, 98
          %v1000 = vpop.permute.xlu0 %999
          %1001 = vrot.lane.b32.xlu0 %v786, 98
          %v1002 = vpop.permute.xlu0 %1001
          %vm1003 = vcmask 801792
          %v1004 = vsel %vm1003, %v998, %v1000
          %v1005 = vsel %vm1003, %v1000, %v1002
          %v1008 = vsel %vm271, %v1004, 0.0
          %v1009 = vsel %vm272, %v1005, 0.0
          %s1010 = sld [smem:[#allocation4 + $0x281]]
          %v1011 = vstv %s1010
          %v1012 = vmul.f32 %v1011, %v1008
          %v1013 = vmul.f32 %v1011, %v1009
          %v1014 = vadd.f32 %v995, %v1012
          %v1015 = vadd.f32 %v996, %v1013
          %1016 = vrot.lane.b32.xlu0 %v784, 97
          %v1017 = vpop.permute.xlu0 %1016
          %1018 = vrot.lane.b32.xlu0 %v785, 97
          %v1019 = vpop.permute.xlu0 %1018
          %1020 = vrot.lane.b32.xlu0 %v786, 97
          %v1021 = vpop.permute.xlu0 %1020
          %vm1022 = vcmask 793600
          %v1023 = vsel %vm1022, %v1017, %v1019
          %v1024 = vsel %vm1022, %v1019, %v1021
          %v1027 = vsel %vm279, %v1023, 0.0
          %v1028 = vsel %vm280, %v1024, 0.0
          %s1029 = sld [smem:[#allocation4 + $0x282]]
          %v1030 = vstv %s1029
          %v1031 = vmul.f32 %v1030, %v1027
          %v1032 = vmul.f32 %v1030, %v1028
          %v1033 = vadd.f32 %v1014, %v1031
          %v1034 = vadd.f32 %v1015, %v1032
          %s1035 = sld [smem:[#allocation4 + $0x283]]
          %v1036 = vstv %s1035
          %v1037 = vmul.f32 %v1036, %v782
          %v1039 = vperm.slane %v1037, 0
          %v1040 = vperm.slane %v1037, 1
          %v1041 = vperm.slane %v1037, 2
          %1042 = vrot.lane.b32.xlu0 %v1039, 96
          %v1043 = vpop.permute.xlu0 %1042
          %1044 = vrot.lane.b32.xlu0 %v1040, 96
          %v1045 = vpop.permute.xlu0 %1044
          %1046 = vrot.lane.b32.xlu0 %v1041, 96
          %v1047 = vpop.permute.xlu0 %1046
          %vm1048 = vcmask 785408
          %v1049 = vsel %vm1048, %v1043, %v1045
          %v1050 = vsel %vm1048, %v1045, %v1047
          %v1053 = vadd.f32 %v1033, %v1049
          %v1054 = vadd.f32 %v1034, %v1050
          %1055 = vrot.lane.b32.xlu0 %v784, 95
          %v1056 = vpop.permute.xlu0 %1055
          %1057 = vrot.lane.b32.xlu0 %v785, 95
          %v1058 = vpop.permute.xlu0 %1057
          %1059 = vrot.lane.b32.xlu0 %v786, 95
          %v1060 = vpop.permute.xlu0 %1059
          %vm1061 = vcmask 777216
          %v1062 = vsel %vm1061, %v1056, %v1058
          %v1063 = vsel %vm1061, %v1058, %v1060
          %v1066 = vsel %vm287, %v1062, 0.0
          %v1067 = vsel %vm288, %v1063, 0.0
          %s1068 = sld [smem:[#allocation4 + $0x284]]
          %v1069 = vstv %s1068
          %v1070 = vmul.f32 %v1069, %v1066
          %v1071 = vmul.f32 %v1069, %v1067
          %v1072 = vadd.f32 %v1053, %v1070
          %v1073 = vadd.f32 %v1054, %v1071
          %1074 = vrot.lane.b32.xlu0 %v784, 94
          %v1075 = vpop.permute.xlu0 %1074
          %1076 = vrot.lane.b32.xlu0 %v785, 94
          %v1077 = vpop.permute.xlu0 %1076
          %1078 = vrot.lane.b32.xlu0 %v786, 94
          %v1079 = vpop.permute.xlu0 %1078
          %vm1080 = vcmask 769024
          %v1081 = vsel %vm1080, %v1075, %v1077
          %v1082 = vsel %vm1080, %v1077, %v1079
          %v1085 = vsel %vm295, %v1081, 0.0
          %v1086 = vsel %vm296, %v1082, 0.0
          %s1087 = sld [smem:[#allocation4 + $0x285]]
          %v1088 = vstv %s1087
          %v1089 = vmul.f32 %v1088, %v1085
          %v1090 = vmul.f32 %v1088, %v1086
          %v1091 = vadd.f32 %v1072, %v1089
          %v1092 = vadd.f32 %v1073, %v1090
          %1093 = vrot.lane.b32.xlu0 %v784, 93
          %v1094 = vpop.permute.xlu0 %1093
          %1095 = vrot.lane.b32.xlu0 %v785, 93
          %v1096 = vpop.permute.xlu0 %1095
          %1097 = vrot.lane.b32.xlu0 %v786, 93
          %v1098 = vpop.permute.xlu0 %1097
          %vm1099 = vcmask 760832
          %v1100 = vsel %vm1099, %v1094, %v1096
          %v1101 = vsel %vm1099, %v1096, %v1098
          %v1104 = vsel %vm303, %v1100, 0.0
          %v1105 = vsel %vm304, %v1101, 0.0
          %s1106 = sld [smem:[#allocation4 + $0x286]]
          %v1107 = vstv %s1106
          %v1108 = vmul.f32 %v1107, %v1104
          %v1109 = vmul.f32 %v1107, %v1105
          %v1110 = vadd.f32 %v1091, %v1108
          %v1111 = vadd.f32 %v1092, %v1109
          %1112 = vrot.lane.b32.xlu0 %v784, 83
          %v1113 = vpop.permute.xlu0 %1112
          %1114 = vrot.lane.b32.xlu0 %v785, 83
          %v1115 = vpop.permute.xlu0 %1114
          %1116 = vrot.lane.b32.xlu0 %v786, 83
          %v1117 = vpop.permute.xlu0 %1116
          %vm1118 = vcmask 678912
          %v1119 = vsel %vm1118, %v1113, %v1115
          %v1120 = vsel %vm1118, %v1115, %v1117
          %v1123 = vsel %vm263, %v1119, 0.0
          %v1124 = vsel %vm264, %v1120, 0.0
          %s1125 = sld [smem:[#allocation4 + $0x300]]
          %v1126 = vstv %s1125
          %v1127 = vmul.f32 %v1126, %v1123
          %v1128 = vmul.f32 %v1126, %v1124
          %v1129 = vadd.f32 %v1110, %v1127
          %v1130 = vadd.f32 %v1111, %v1128
          %1131 = vrot.lane.b32.xlu0 %v784, 82
          %v1132 = vpop.permute.xlu0 %1131
          %1133 = vrot.lane.b32.xlu0 %v785, 82
          %v1134 = vpop.permute.xlu0 %1133
          %1135 = vrot.lane.b32.xlu0 %v786, 82
          %v1136 = vpop.permute.xlu0 %1135
          %vm1137 = vcmask 670720
          %v1138 = vsel %vm1137, %v1132, %v1134
          %v1139 = vsel %vm1137, %v1134, %v1136
          %v1142 = vsel %vm271, %v1138, 0.0
          %v1143 = vsel %vm272, %v1139, 0.0
          %s1144 = sld [smem:[#allocation4 + $0x301]]
          %v1145 = vstv %s1144
          %v1146 = vmul.f32 %v1145, %v1142
          %v1147 = vmul.f32 %v1145, %v1143
          %v1148 = vadd.f32 %v1129, %v1146
          %v1149 = vadd.f32 %v1130, %v1147
          %1150 = vrot.lane.b32.xlu0 %v784, 81
          %v1151 = vpop.permute.xlu0 %1150
          %1152 = vrot.lane.b32.xlu0 %v785, 81
          %v1153 = vpop.permute.xlu0 %1152
          %1154 = vrot.lane.b32.xlu0 %v786, 81
          %v1155 = vpop.permute.xlu0 %1154
          %vm1156 = vcmask 662528
          %v1157 = vsel %vm1156, %v1151, %v1153
          %v1158 = vsel %vm1156, %v1153, %v1155
          %v1161 = vsel %vm279, %v1157, 0.0
          %v1162 = vsel %vm280, %v1158, 0.0
          %s1163 = sld [smem:[#allocation4 + $0x302]]
          %v1164 = vstv %s1163
          %v1165 = vmul.f32 %v1164, %v1161
          %v1166 = vmul.f32 %v1164, %v1162
          %v1167 = vadd.f32 %v1148, %v1165
          %v1168 = vadd.f32 %v1149, %v1166
          %s1169 = sld [smem:[#allocation4 + $0x303]]
          %v1170 = vstv %s1169
          %v1171 = vmul.f32 %v1170, %v782
          %v1173 = vperm.slane %v1171, 0
          %v1174 = vperm.slane %v1171, 1
          %v1175 = vperm.slane %v1171, 2
          %1176 = vrot.lane.b32.xlu0 %v1173, 80
          %v1177 = vpop.permute.xlu0 %1176
          %1178 = vrot.lane.b32.xlu0 %v1174, 80
          %v1179 = vpop.permute.xlu0 %1178
          %1180 = vrot.lane.b32.xlu0 %v1175, 80
          %v1181 = vpop.permute.xlu0 %1180
          %vm1182 = vcmask 654336
          %v1183 = vsel %vm1182, %v1177, %v1179
          %v1184 = vsel %vm1182, %v1179, %v1181
          %v1187 = vadd.f32 %v1167, %v1183
          %v1188 = vadd.f32 %v1168, %v1184
          %1189 = vrot.lane.b32.xlu0 %v784, 79
          %v1190 = vpop.permute.xlu0 %1189
          %1191 = vrot.lane.b32.xlu0 %v785, 79
          %v1192 = vpop.permute.xlu0 %1191
          %1193 = vrot.lane.b32.xlu0 %v786, 79
          %v1194 = vpop.permute.xlu0 %1193
          %vm1195 = vcmask 646144
          %v1196 = vsel %vm1195, %v1190, %v1192
          %v1197 = vsel %vm1195, %v1192, %v1194
          %v1200 = vsel %vm287, %v1196, 0.0
          %v1201 = vsel %vm288, %v1197, 0.0
          %s1202 = sld [smem:[#allocation4 + $0x304]]
          %v1203 = vstv %s1202
          %v1204 = vmul.f32 %v1203, %v1200
          %v1205 = vmul.f32 %v1203, %v1201
          %v1206 = vadd.f32 %v1187, %v1204
          %v1207 = vadd.f32 %v1188, %v1205
          %1208 = vrot.lane.b32.xlu0 %v784, 78
          %v1209 = vpop.permute.xlu0 %1208
          %1210 = vrot.lane.b32.xlu0 %v785, 78
          %v1211 = vpop.permute.xlu0 %1210
          %1212 = vrot.lane.b32.xlu0 %v786, 78
          %v1213 = vpop.permute.xlu0 %1212
          %vm1214 = vcmask 637952
          %v1215 = vsel %vm1214, %v1209, %v1211
          %v1216 = vsel %vm1214, %v1211, %v1213
          %v1219 = vsel %vm295, %v1215, 0.0
          %v1220 = vsel %vm296, %v1216, 0.0
          %s1221 = sld [smem:[#allocation4 + $0x305]]
          %v1222 = vstv %s1221
          %v1223 = vmul.f32 %v1222, %v1219
          %v1224 = vmul.f32 %v1222, %v1220
          %v1225 = vadd.f32 %v1206, %v1223
          %v1226 = vadd.f32 %v1207, %v1224
          %1227 = vrot.lane.b32.xlu0 %v784, 77
          %v1228 = vpop.permute.xlu0 %1227
          %1229 = vrot.lane.b32.xlu0 %v785, 77
          %v1230 = vpop.permute.xlu0 %1229
          %1231 = vrot.lane.b32.xlu0 %v786, 77
          %v1232 = vpop.permute.xlu0 %1231
          %vm1233 = vcmask 629760
          %v1234 = vsel %vm1233, %v1228, %v1230
          %v1235 = vsel %vm1233, %v1230, %v1232
          %v1238 = vsel %vm303, %v1234, 0.0
          %v1239 = vsel %vm304, %v1235, 0.0
          %s1240 = sld [smem:[#allocation4 + $0x306]]
          %v1241 = vstv %s1240
          %v1242 = vmul.f32 %v1241, %v1238
          %v1243 = vmul.f32 %v1241, %v1239
          %v1244 = vadd.f32 %v1225, %v1242
          %v1245 = vadd.f32 %v1226, %v1243
          %v1246 = vxor.u32 %v1244, 2147483648
          %v1247 = vxor.u32 %v1245, 2147483648
          %v1248 = vmul.f32 %v1246, 1.442695
          %v1249 = vpow.pop %v1248
          %v1250 = vmul.f32 %v1247, 1.442695
          %v1251 = vpow.pop %v1250
          %v1252 = vadd.f32 %v1249, 1.0
          %v1253 = vadd.f32 %v1251, 1.0
          %v1254 = vrcp.pop %v1252
          %v1255 = vmul.f32 %v1252, %v1254
          %v1256 = vsub.f32 1.0, %v1255
          %v1257 = vmul.f32 %v1254, %v1256
          %v1258 = vadd.f32 %v1254, %v1257
          %vm1259 = vweird.f32 %v1252
          %vm1260 = vweird.f32 %v1254
          %vm1261 = vmor %vm1259, %vm1260
          %v1262 = vsel %vm1261, %v1254, %v1258
          %v1263 = vand.u32 2147483647, %v1252
          %vm1264 = vcmp.eq.f32.partialorder %v1263, 8.507059e+37
          %v1265 = vand.u32 %v1252, 2147483648
          %v1266 = vor.u32 1.1754944e-38, %v1265
          %v1267 = vsel %vm1264, %v1266, %v1262
          %v1268 = vmul.f32 1.0, %v1267
          %v1269 = vrcp.pop %v1253
          %v1270 = vmul.f32 %v1253, %v1269
          %v1271 = vsub.f32 1.0, %v1270
          %v1272 = vmul.f32 %v1269, %v1271
          %v1273 = vadd.f32 %v1269, %v1272
          %vm1274 = vweird.f32 %v1253
          %vm1275 = vweird.f32 %v1269
          %vm1276 = vmor %vm1274, %vm1275
          %v1277 = vsel %vm1276, %v1269, %v1273
          %v1278 = vand.u32 2147483647, %v1253
          %vm1279 = vcmp.eq.f32.partialorder %v1278, 8.507059e+37
          %v1280 = vand.u32 %v1253, 2147483648
          %v1281 = vor.u32 1.1754944e-38, %v1280
          %v1282 = vsel %vm1279, %v1281, %v1277
          %v1283 = vmul.f32 1.0, %v1282
          %v1286 = vrot.slane %v1283, 7
          %v1287 = vsel %vm218, %v1268, %v1286
          %1289 = vst.msk [vmem:[%s191] sm:$0x3] %vm225, %v1287
        $region44: #{tpu_custom_call.1} parent=27 // pred_fallthru
          _
        %s1290 = sand.u32 %s89, 1
        %s1291 = scalar_lea.sflag [#allocation6], %s1290
        %s1292 = sand.u32 %s89, 1
        %s1293 = smul.addr %s1292, 2
        %s1294 = scalar_lea.vmem [#allocation9], %s1293
        // Predicated region
        $region45: #{tpu_custom_call.1} parent=27 // pred_check
          %p1295 = pneg %p99
        $region46: #{tpu_custom_call.1} parent=27 // pred_check_branch
          %1297 = sbr.rel (%p1295) target = $region48
        $region47: #{tpu_custom_call.1} parent=27 // pred_region
          %1299 = vsyncadd %s1291, 0
          %s1300 = smul.addr %s24, 2
          %s1301 = scalar_lea.hbm %s2, %s1300
          %s1303 = sshll.u32 %s1294, 4
          %s1304 = int_to_ptr.vmem [resolvable:$true] %s1303
          %s1305 = sshll.u32 %s1301, 4
          %s1306 = int_to_ptr.hbm [resolvable:$true] %s1305
          %1308 = dma.vmem_to_hbm [thread:$0]  %s1304, 32, %s1306, %s1291
        $region48: #{tpu_custom_call.1} parent=27 // pred_fallthru
          _
      $region28: #{tpu_custom_call.1} parent=5 // pred_fallthru
        _
      %p1309 = scmp.le.s32.totalorder 2, %s15
      // Predicated region
      $region49: #{tpu_custom_call.1} parent=5 // pred_check
        %p1310 = pneg %p1309
      $region50: #{tpu_custom_call.1} parent=5 // pred_check_branch
        %1312 = sbr.rel (%p1310) target = $region52
      $region51: #{tpu_custom_call.1} parent=5 // pred_region
        %s1313 = ssub.s32 %s15, 2
        // Predicated region
        $region53: #{tpu_custom_call.1} parent=51 // pred_check
          %p1314 = pneg %p105
        $region54: #{tpu_custom_call.1} parent=51 // pred_check_branch
          %1316 = sbr.rel (%p1314) target = $region56
        $region55: #{tpu_custom_call.1} parent=51 // pred_region
          %s1317 = sand.u32 %s90, 1
          %s1318 = scalar_lea.sflag [#allocation6], %s1317
          %s1319 = sand.u32 %s90, 1
          %s1320 = smul.addr %s1319, 2
          %s1321 = scalar_lea.vmem [#allocation9], %s1320
          %1323 = dma.done %s1318, 32
        $region56: #{tpu_custom_call.1} parent=51 // pred_fallthru
          _
      $region52: #{tpu_custom_call.1} parent=5 // pred_fallthru
        _
    $region6: #{tpu_custom_call.1} parent=1 // loop_footer
      %s19 = sadd.s32 1, %s15
    $region7: #{tpu_custom_call.1} parent=1 // loop_footer_branch
      %14 = sbr.rel target = $region3
    $region8: #{tpu_custom_call.1} parent=1 // loop_exit
      _
    %1324 = vsyncpa [#allocation5], 1
    %s1325 = scalar_lea.sflag [#allocation5], 1
    %1326 = vsyncpa %s1325, 1
    %1327 = vsyncpa [#allocation6], 1
    %s1328 = scalar_lea.sflag [#allocation6], 1
    %1329 = vsyncpa %s1328, 1
    %1330 = vsyncpa [#allocation7], 1
    %s1331 = scalar_lea.sflag [#allocation7], 1
    %1332 = vsyncpa %s1331, 1

</llo_original>
